<compile_context>
chip_gen: v5e
topology: v5e:2x2
jax: 0.10.0
libtpu: 0.0.40
codegen_flags: <defaults>
</compile_context>

<pallas_src>
import functools

import jax
import jax.numpy as jnp
from jax.experimental import pallas as pl
from jax.experimental.pallas import tpu as pltpu


# ----------------------------- kernel ----------------------------------------

def _graph_rd_bias_kernel(pos_row_ref, pos_col_ref, mu_ref, a_ref, w_ref, bg_ref,
                          we_ref, be_ref,
                          bias_ref, merge_ref,
                          e_scr, se_scr,
                          *, num_heads, num_kernel):
    # pos_row: [TQ, 2] (this row tile), pos_col: [2, Np] (all padded nodes, transposed)
    dx = pos_row_ref[:, 0:1] - pos_col_ref[0:1, :]            # [TQ, Np]
    dy = pos_row_ref[:, 1:2] - pos_col_ref[1:2, :]            # [TQ, Np]
    dist = jnp.sqrt(dx * dx + dy * dy)                        # [TQ, Np]

    # Pass 1: Gaussian basis maps, one [TQ, Np] map live at a time, streamed into
    # the VMEM scratch.  a_k = -0.5 / (sigma_k^2 + 1e-6) precomputed on the host
    # (keeps the exact (d - mu)^2 form of the reference; no N^2 divide in-kernel).
    for k in range(num_kernel):
        d = dist - mu_ref[k]
        e = jnp.exp(a_ref[k] * (d * d))                       # [TQ, Np]
        e_scr[k] = e
        se_scr[:, k:k + 1] = jnp.sum(e, axis=-1, keepdims=True)

    # Pass 2: K->H projection + ReLU.  One dense head slab per store
    # (equivalent of .permute(2, 0, 1) in the torch code).
    # w is the flattened [K, H] weight, index = k * H + h.
    for h in range(num_heads):
        acc = w_ref[h] * e_scr[0] + bg_ref[h]                 # k = 0 term
        for k in range(1, num_kernel):
            acc = acc + w_ref[k * num_heads + h] * e_scr[k]
        bias_ref[h] = jnp.maximum(acc, 0.0)

    # merge_edge_features for this row tile: one MXU matmul [TQ, K] @ [K, E].
    merge_ref[...] = (jnp.dot(se_scr[...], we_ref[...],
                              preferred_element_type=jnp.float32)
                      + be_ref[...])


# ----------------------------- tiling ----------------------------------------

def _pick_row_tile(np_pad, num_heads, num_kernel, e_out,
                   vmem_budget_bytes=40 << 20, acc_bytes_cap=64 << 10):
    """Largest power-of-two row tile TQ that
       * divides the padded node count,
       * keeps all VMEM residents (double-buffered I/O blocks + scratch) in budget
         (budget < v7x's 64 MiB physical VMEM with headroom),
       * keeps the per-head f32 accumulator small enough to live in vregs,
       * leaves >= 2 grid steps so both TensorCores get work."""
    def resident_bytes(t):
        return (2 * num_heads * t * np_pad * 4        # bias out block (double-buffered)
                + 2 * t * e_out * 4                   # merge out block
                + num_kernel * t * np_pad * 4         # basis-map scratch
                + t * max(num_kernel, 128) * 4        # row-sum scratch (lane padded)
                + 2 * (t * 2 + 2 * np_pad) * 4        # position blocks
                + 2 * (num_kernel + 1) * e_out * 4)   # edge-proj weights / bias

    best = 8
    t = 8
    while t <= np_pad:
        if (np_pad % t == 0 and np_pad // t >= 2
                and resident_bytes(t) <= vmem_budget_bytes
                and t * np_pad * 4 <= acc_bytes_cap):
            best = t
        t *= 2
    return best, resident_bytes(best)


# ----------------------------- wrapper ----------------------------------------

def graph_rd_bias_forward(params, res_pos, *, num_heads, num_kernel, embed_dim):
    n = res_pos.shape[0]
    np_pad = ((n + 127) // 128) * 128
    pad = np_pad - n

    # Pad with a far-away sentinel: padded pseudo-nodes have huge distances to all
    # real nodes, so exp(a * (d - mu)^2) underflows to exactly 0 (a < 0) and they
    # contribute nothing to the row sums of real rows.
    pos = res_pos.astype(jnp.float32)
    if pad:
        pos = jnp.pad(pos, ((0, pad), (0, 0)), constant_values=1.0e6)

    if params["w_edge"] is not None:
        w_edge, b_edge, e_out = params["w_edge"], params["b_edge"], embed_dim
    else:
        # num_kernel == embed_dim: torch module returns the raw row sums;
        # identity weights keep the kernel code path uniform.
        w_edge = jnp.eye(num_kernel, dtype=jnp.float32)
        b_edge = jnp.zeros((1, num_kernel), jnp.float32)
        e_out = num_kernel

    tq, resident = _pick_row_tile(np_pad, num_heads, num_kernel, e_out)

    # Host-side precompute (tiny [K] ops), all small params flattened for 1-D SMEM.
    a = (-0.5 / (params["sigma"].astype(jnp.float32) ** 2 + 1e-6)).reshape(-1)  # [K]
    mu = params["mu"].astype(jnp.float32).reshape(-1)                           # [K]
    w_gbf = params["w_gbf"].astype(jnp.float32).reshape(-1)                     # [K*H]
    b_gbf = params["b_gbf"].astype(jnp.float32).reshape(-1)                     # [H]

    kern = functools.partial(_graph_rd_bias_kernel,
                             num_heads=num_heads, num_kernel=num_kernel)
    smem = pl.BlockSpec(memory_space=pltpu.MemorySpace.SMEM)

    bias_p, merge_p = pl.pallas_call(
        kern,
        out_shape=(jax.ShapeDtypeStruct((num_heads, np_pad, np_pad), jnp.float32),
                   jax.ShapeDtypeStruct((np_pad, e_out), jnp.float32)),
        grid=(np_pad // tq,),
        in_specs=[
            pl.BlockSpec((tq, 2), lambda i: (i, 0)),              # pos rows   [TQ, 2]
            pl.BlockSpec((2, np_pad), lambda i: (0, 0)),          # pos cols   [2, Np]
            smem,                                                 # mu     [K]
            smem,                                                 # a      [K]
            smem,                                                 # w_gbf  [K*H]
            smem,                                                 # b_gbf  [H]
            pl.BlockSpec((num_kernel, e_out), lambda i: (0, 0)),  # w_edge [K, E]
            pl.BlockSpec((1, e_out), lambda i: (0, 0)),           # b_edge [1, E]
        ],
        out_specs=(pl.BlockSpec((num_heads, tq, np_pad), lambda i: (0, i, 0)),
                   pl.BlockSpec((tq, e_out), lambda i: (i, 0))),
        scratch_shapes=[pltpu.VMEM((num_kernel, tq, np_pad), jnp.float32),
                        pltpu.VMEM((tq, num_kernel), jnp.float32)],
        compiler_params=pltpu.CompilerParams(
            dimension_semantics=("parallel",),
            vmem_limit_bytes=int(min(max(resident + (16 << 20), 32 << 20),
                                     48 << 20))),
    )(pos, pos.T, mu, a, w_gbf, b_gbf, w_edge, b_edge)

    if pad:
        return bias_p[:, :n, :n], merge_p[:n]
    return bias_p, merge_p


# ----------------------------- reference (pure JAX) ---------------------------

def reference_forward(params, res_pos):
    diff = res_pos[:, None, :] - res_pos[None, :, :]
    dist = jnp.sqrt(jnp.sum(diff * diff, axis=-1, keepdims=True))     # [N,N,1]
    dd = dist - params["mu"]                                          # [N,N,K]
    edge = jnp.exp(-0.5 * dd * dd / (params["sigma"] ** 2 + 1e-6))    # [N,N,K]
    gbf = jax.nn.relu(edge @ params["w_gbf"] + params["b_gbf"])       # [N,N,H]
    bias = jnp.transpose(gbf, (2, 0, 1))                              # [H,N,N]
    se = edge.sum(axis=-2)                                            # [N,K]
    if params["w_edge"] is not None:
        merge = se @ params["w_edge"] + params["b_edge"]
    else:
        merge = se
    return bias, merge


# ----------------------------- params / main ----------------------------------

def init_params(key, num_heads, embed_dim, num_kernel):
    ks = jax.random.split(key, 6)
    nrm = lambda k, shape, s=1.0: s * jax.random.normal(k, shape, jnp.float32)
    params = {
        # GaussianLayer
        "mu": nrm(ks[0], (1, num_kernel)),
        "sigma": nrm(ks[1], (1, num_kernel)),
        # gbf_proj (NonLinear): Linear(K -> H), weights stored pre-transposed
        "w_gbf": nrm(ks[2], (num_kernel, num_heads), 0.5),
        "b_gbf": nrm(ks[3], (1, num_heads), 0.5),
    }
    if num_kernel != embed_dim:
        # edge_proj: Linear(K -> embed_dim), weights stored pre-transposed
        params["w_edge"] = nrm(ks[4], (num_kernel, embed_dim), 0.5)
        params["b_edge"] = nrm(ks[5], (1, embed_dim), 0.5)
    else:
        params["w_edge"] = None
        params["b_edge"] = None
    return params


if __name__ == "__main__":
    N, HEADS, NUM_KERNEL, EMBED_DIM = 16, 8, 4, 32
    key = jax.random.PRNGKey(0)
    kp, kparam = jax.random.split(key)
    res_pos = jax.random.normal(kp, (N, 2), jnp.float32)
    params = init_params(kparam, HEADS, EMBED_DIM, NUM_KERNEL)

    bias, merge = graph_rd_bias_forward(
        params, res_pos,
        num_heads=HEADS, num_kernel=NUM_KERNEL, embed_dim=EMBED_DIM)
    jax.block_until_ready((bias, merge))

    ref_bias, ref_merge = reference_forward(params, res_pos)
    assert bias.shape == (HEADS, N, N)
    assert merge.shape == (N, EMBED_DIM)
    assert jnp.allclose(bias, ref_bias, rtol=2e-2, atol=2e-2)
    assert jnp.allclose(merge, ref_merge, rtol=2e-2, atol=2e-2)
    print("KERNEL_OK")
</pallas_src>

<mosaic_0001>
module attributes {stable_mosaic.version = 11 : i64} {
  func.func @_graph_rd_bias_kernel(%arg0: i32, %arg1: memref<64x2xf32, #tpu.memory_space<vmem>>, %arg2: memref<2x128xf32, #tpu.memory_space<vmem>>, %arg3: memref<4xf32, #tpu.memory_space<smem>>, %arg4: memref<4xf32, #tpu.memory_space<smem>>, %arg5: memref<32xf32, #tpu.memory_space<smem>>, %arg6: memref<8xf32, #tpu.memory_space<smem>>, %arg7: memref<4x32xf32, #tpu.memory_space<vmem>>, %arg8: memref<1x32xf32, #tpu.memory_space<vmem>>, %arg9: memref<8x64x128xf32, #tpu.memory_space<vmem>>, %arg10: memref<64x32xf32, #tpu.memory_space<vmem>>, %arg11: memref<4x64x128xf32, #tpu.memory_space<vmem>>, %arg12: memref<64x4xf32, #tpu.memory_space<vmem>>) attributes {dimension_semantics = [#tpu.dimension_semantics<parallel>], iteration_bounds = array<i64: 2>, scalar_prefetch = 0 : i64, scratch_operands = 2 : i64, tpu.core_type = #tpu.core_type<tc>, window_params = [{transform_indices = @transform_0, window_bounds = array<i64: 64, 2>}, {pipeline_mode = #tpu.pipeline_mode<synchronous>, transform_indices = @transform_1, window_bounds = array<i64: 2, 128>}, {transform_indices = @transform_2, window_bounds = array<i64: 4>}, {transform_indices = @transform_3, window_bounds = array<i64: 4>}, {transform_indices = @transform_4, window_bounds = array<i64: 32>}, {transform_indices = @transform_5, window_bounds = array<i64: 8>}, {pipeline_mode = #tpu.pipeline_mode<synchronous>, transform_indices = @transform_6, window_bounds = array<i64: 4, 32>}, {pipeline_mode = #tpu.pipeline_mode<synchronous>, transform_indices = @transform_7, window_bounds = array<i64: 1, 32>}, {transform_indices = @transform_8, window_bounds = array<i64: 8, 64, 128>}, {transform_indices = @transform_9, window_bounds = array<i64: 64, 32>}]} {
    %c0 = arith.constant 0 : index
    %c0_0 = arith.constant 0 : index
    %0 = vector.load %arg1[%c0, %c0_0] : memref<64x2xf32, #tpu.memory_space<vmem>>, vector<64x1xf32>
    %c0_1 = arith.constant 0 : index
    %c0_2 = arith.constant 0 : index
    %1 = vector.load %arg2[%c0_1, %c0_2] : memref<2x128xf32, #tpu.memory_space<vmem>>, vector<1x128xf32>
    %2 = vector.broadcast %0 : vector<64x1xf32> to vector<64x128xf32>
    %3 = vector.broadcast %1 : vector<1x128xf32> to vector<64x128xf32>
    %4 = arith.subf %2, %3 : vector<64x128xf32>
    %c0_3 = arith.constant 0 : index
    %c1 = arith.constant 1 : index
    %5 = vector.load %arg1[%c0_3, %c1] : memref<64x2xf32, #tpu.memory_space<vmem>>, vector<64x1xf32>
    %c1_4 = arith.constant 1 : index
    %c0_5 = arith.constant 0 : index
    %6 = vector.load %arg2[%c1_4, %c0_5] : memref<2x128xf32, #tpu.memory_space<vmem>>, vector<1x128xf32>
    %7 = vector.broadcast %5 : vector<64x1xf32> to vector<64x128xf32>
    %8 = vector.broadcast %6 : vector<1x128xf32> to vector<64x128xf32>
    %9 = arith.subf %7, %8 : vector<64x128xf32>
    %10 = arith.mulf %4, %4 : vector<64x128xf32>
    %11 = arith.mulf %9, %9 : vector<64x128xf32>
    %12 = arith.addf %10, %11 : vector<64x128xf32>
    %13 = math.sqrt %12 : vector<64x128xf32>
    %c0_6 = arith.constant 0 : index
    %14 = memref.load %arg3[%c0_6] : memref<4xf32, #tpu.memory_space<smem>>
    %15 = vector.broadcast %14 : f32 to vector<64x128xf32>
    %16 = arith.subf %13, %15 : vector<64x128xf32>
    %c0_7 = arith.constant 0 : index
    %17 = memref.load %arg4[%c0_7] : memref<4xf32, #tpu.memory_space<smem>>
    %18 = arith.mulf %16, %16 : vector<64x128xf32>
    %19 = vector.broadcast %17 : f32 to vector<64x128xf32>
    %20 = arith.mulf %19, %18 : vector<64x128xf32>
    %21 = math.exp %20 : vector<64x128xf32>
    %c0_8 = arith.constant 0 : index
    %c0_9 = arith.constant 0 : index
    %c0_10 = arith.constant 0 : index
    %22 = vector.load %arg11[%c0_8, %c0_9, %c0_10] : memref<4x64x128xf32, #tpu.memory_space<vmem>>, vector<1x64x128xf32>
    %23 = vector.shape_cast %22 : vector<1x64x128xf32> to vector<64x128xf32>
    %24 = vector.shape_cast %21 : vector<64x128xf32> to vector<1x64x128xf32>
    tpu.vector_store %arg11[%c0_8, %c0_9, %c0_10], %24 {strides = array<i32>} : memref<4x64x128xf32, #tpu.memory_space<vmem>>, vector<1x64x128xf32>,
    %cst = arith.constant dense<0.000000e+00> : vector<64xf32>
    %25 = vector.multi_reduction <add>, %21, %cst [1] : vector<64x128xf32> to vector<64xf32>
    %26 = vector.shape_cast %25 : vector<64xf32> to vector<64x1xf32>
    %c0_11 = arith.constant 0 : index
    %c0_12 = arith.constant 0 : index
    %27 = vector.load %arg12[%c0_11, %c0_12] : memref<64x4xf32, #tpu.memory_space<vmem>>, vector<64x1xf32>
    tpu.vector_store %arg12[%c0_11, %c0_12], %26 {strides = array<i32>} : memref<64x4xf32, #tpu.memory_space<vmem>>, vector<64x1xf32>,
    %c1_13 = arith.constant 1 : index
    %28 = memref.load %arg3[%c1_13] : memref<4xf32, #tpu.memory_space<smem>>
    %29 = vector.broadcast %28 : f32 to vector<64x128xf32>
    %30 = arith.subf %13, %29 : vector<64x128xf32>
    %c1_14 = arith.constant 1 : index
    %31 = memref.load %arg4[%c1_14] : memref<4xf32, #tpu.memory_space<smem>>
    %32 = arith.mulf %30, %30 : vector<64x128xf32>
    %33 = vector.broadcast %31 : f32 to vector<64x128xf32>
    %34 = arith.mulf %33, %32 : vector<64x128xf32>
    %35 = math.exp %34 : vector<64x128xf32>
    %c1_15 = arith.constant 1 : index
    %c0_16 = arith.constant 0 : index
    %c0_17 = arith.constant 0 : index
    %36 = vector.load %arg11[%c1_15, %c0_16, %c0_17] : memref<4x64x128xf32, #tpu.memory_space<vmem>>, vector<1x64x128xf32>
    %37 = vector.shape_cast %36 : vector<1x64x128xf32> to vector<64x128xf32>
    %38 = vector.shape_cast %35 : vector<64x128xf32> to vector<1x64x128xf32>
    tpu.vector_store %arg11[%c1_15, %c0_16, %c0_17], %38 {strides = array<i32>} : memref<4x64x128xf32, #tpu.memory_space<vmem>>, vector<1x64x128xf32>,
    %cst_18 = arith.constant dense<0.000000e+00> : vector<64xf32>
    %39 = vector.multi_reduction <add>, %35, %cst_18 [1] : vector<64x128xf32> to vector<64xf32>
    %40 = vector.shape_cast %39 : vector<64xf32> to vector<64x1xf32>
    %c0_19 = arith.constant 0 : index
    %c1_20 = arith.constant 1 : index
    %41 = vector.load %arg12[%c0_19, %c1_20] : memref<64x4xf32, #tpu.memory_space<vmem>>, vector<64x1xf32>
    tpu.vector_store %arg12[%c0_19, %c1_20], %40 {strides = array<i32>} : memref<64x4xf32, #tpu.memory_space<vmem>>, vector<64x1xf32>,
    %c2 = arith.constant 2 : index
    %42 = memref.load %arg3[%c2] : memref<4xf32, #tpu.memory_space<smem>>
    %43 = vector.broadcast %42 : f32 to vector<64x128xf32>
    %44 = arith.subf %13, %43 : vector<64x128xf32>
    %c2_21 = arith.constant 2 : index
    %45 = memref.load %arg4[%c2_21] : memref<4xf32, #tpu.memory_space<smem>>
    %46 = arith.mulf %44, %44 : vector<64x128xf32>
    %47 = vector.broadcast %45 : f32 to vector<64x128xf32>
    %48 = arith.mulf %47, %46 : vector<64x128xf32>
    %49 = math.exp %48 : vector<64x128xf32>
    %c2_22 = arith.constant 2 : index
    %c0_23 = arith.constant 0 : index
    %c0_24 = arith.constant 0 : index
    %50 = vector.load %arg11[%c2_22, %c0_23, %c0_24] : memref<4x64x128xf32, #tpu.memory_space<vmem>>, vector<1x64x128xf32>
    %51 = vector.shape_cast %50 : vector<1x64x128xf32> to vector<64x128xf32>
    %52 = vector.shape_cast %49 : vector<64x128xf32> to vector<1x64x128xf32>
    tpu.vector_store %arg11[%c2_22, %c0_23, %c0_24], %52 {strides = array<i32>} : memref<4x64x128xf32, #tpu.memory_space<vmem>>, vector<1x64x128xf32>,
    %cst_25 = arith.constant dense<0.000000e+00> : vector<64xf32>
    %53 = vector.multi_reduction <add>, %49, %cst_25 [1] : vector<64x128xf32> to vector<64xf32>
    %54 = vector.shape_cast %53 : vector<64xf32> to vector<64x1xf32>
    %c0_26 = arith.constant 0 : index
    %c2_27 = arith.constant 2 : index
    %55 = vector.load %arg12[%c0_26, %c2_27] : memref<64x4xf32, #tpu.memory_space<vmem>>, vector<64x1xf32>
    tpu.vector_store %arg12[%c0_26, %c2_27], %54 {strides = array<i32>} : memref<64x4xf32, #tpu.memory_space<vmem>>, vector<64x1xf32>,
    %c3 = arith.constant 3 : index
    %56 = memref.load %arg3[%c3] : memref<4xf32, #tpu.memory_space<smem>>
    %57 = vector.broadcast %56 : f32 to vector<64x128xf32>
    %58 = arith.subf %13, %57 : vector<64x128xf32>
    %c3_28 = arith.constant 3 : index
    %59 = memref.load %arg4[%c3_28] : memref<4xf32, #tpu.memory_space<smem>>
    %60 = arith.mulf %58, %58 : vector<64x128xf32>
    %61 = vector.broadcast %59 : f32 to vector<64x128xf32>
    %62 = arith.mulf %61, %60 : vector<64x128xf32>
    %63 = math.exp %62 : vector<64x128xf32>
    %c3_29 = arith.constant 3 : index
    %c0_30 = arith.constant 0 : index
    %c0_31 = arith.constant 0 : index
    %64 = vector.load %arg11[%c3_29, %c0_30, %c0_31] : memref<4x64x128xf32, #tpu.memory_space<vmem>>, vector<1x64x128xf32>
    %65 = vector.shape_cast %64 : vector<1x64x128xf32> to vector<64x128xf32>
    %66 = vector.shape_cast %63 : vector<64x128xf32> to vector<1x64x128xf32>
    tpu.vector_store %arg11[%c3_29, %c0_30, %c0_31], %66 {strides = array<i32>} : memref<4x64x128xf32, #tpu.memory_space<vmem>>, vector<1x64x128xf32>,
    %cst_32 = arith.constant dense<0.000000e+00> : vector<64xf32>
    %67 = vector.multi_reduction <add>, %63, %cst_32 [1] : vector<64x128xf32> to vector<64xf32>
    %68 = vector.shape_cast %67 : vector<64xf32> to vector<64x1xf32>
    %c0_33 = arith.constant 0 : index
    %c3_34 = arith.constant 3 : index
    %69 = vector.load %arg12[%c0_33, %c3_34] : memref<64x4xf32, #tpu.memory_space<vmem>>, vector<64x1xf32>
    tpu.vector_store %arg12[%c0_33, %c3_34], %68 {strides = array<i32>} : memref<64x4xf32, #tpu.memory_space<vmem>>, vector<64x1xf32>,
    %c0_35 = arith.constant 0 : index
    %70 = memref.load %arg5[%c0_35] : memref<32xf32, #tpu.memory_space<smem>>
    %c0_36 = arith.constant 0 : index
    %c0_37 = arith.constant 0 : index
    %c0_38 = arith.constant 0 : index
    %71 = vector.load %arg11[%c0_36, %c0_37, %c0_38] : memref<4x64x128xf32, #tpu.memory_space<vmem>>, vector<1x64x128xf32>
    %72 = vector.shape_cast %71 : vector<1x64x128xf32> to vector<64x128xf32>
    %73 = vector.broadcast %70 : f32 to vector<64x128xf32>
    %74 = arith.mulf %73, %72 : vector<64x128xf32>
    %c0_39 = arith.constant 0 : index
    %75 = memref.load %arg6[%c0_39] : memref<8xf32, #tpu.memory_space<smem>>
    %76 = vector.broadcast %75 : f32 to vector<64x128xf32>
    %77 = arith.addf %74, %76 : vector<64x128xf32>
    %c8 = arith.constant 8 : index
    %78 = memref.load %arg5[%c8] : memref<32xf32, #tpu.memory_space<smem>>
    %c1_40 = arith.constant 1 : index
    %c0_41 = arith.constant 0 : index
    %c0_42 = arith.constant 0 : index
    %79 = vector.load %arg11[%c1_40, %c0_41, %c0_42] : memref<4x64x128xf32, #tpu.memory_space<vmem>>, vector<1x64x128xf32>
    %80 = vector.shape_cast %79 : vector<1x64x128xf32> to vector<64x128xf32>
    %81 = vector.broadcast %78 : f32 to vector<64x128xf32>
    %82 = arith.mulf %81, %80 : vector<64x128xf32>
    %83 = arith.addf %77, %82 : vector<64x128xf32>
    %c16 = arith.constant 16 : index
    %84 = memref.load %arg5[%c16] : memref<32xf32, #tpu.memory_space<smem>>
    %c2_43 = arith.constant 2 : index
    %c0_44 = arith.constant 0 : index
    %c0_45 = arith.constant 0 : index
    %85 = vector.load %arg11[%c2_43, %c0_44, %c0_45] : memref<4x64x128xf32, #tpu.memory_space<vmem>>, vector<1x64x128xf32>
    %86 = vector.shape_cast %85 : vector<1x64x128xf32> to vector<64x128xf32>
    %87 = vector.broadcast %84 : f32 to vector<64x128xf32>
    %88 = arith.mulf %87, %86 : vector<64x128xf32>
    %89 = arith.addf %83, %88 : vector<64x128xf32>
    %c24 = arith.constant 24 : index
    %90 = memref.load %arg5[%c24] : memref<32xf32, #tpu.memory_space<smem>>
    %c3_46 = arith.constant 3 : index
    %c0_47 = arith.constant 0 : index
    %c0_48 = arith.constant 0 : index
    %91 = vector.load %arg11[%c3_46, %c0_47, %c0_48] : memref<4x64x128xf32, #tpu.memory_space<vmem>>, vector<1x64x128xf32>
    %92 = vector.shape_cast %91 : vector<1x64x128xf32> to vector<64x128xf32>
    %93 = vector.broadcast %90 : f32 to vector<64x128xf32>
    %94 = arith.mulf %93, %92 : vector<64x128xf32>
    %95 = arith.addf %89, %94 : vector<64x128xf32>
    %cst_49 = arith.constant 0.000000e+00 : f32
    %96 = vector.broadcast %cst_49 : f32 to vector<64x128xf32>
    %97 = arith.maximumf %95, %96 : vector<64x128xf32>
    %c0_50 = arith.constant 0 : index
    %c0_51 = arith.constant 0 : index
    %c0_52 = arith.constant 0 : index
    %98 = vector.load %arg9[%c0_50, %c0_51, %c0_52] : memref<8x64x128xf32, #tpu.memory_space<vmem>>, vector<1x64x128xf32>
    %99 = vector.shape_cast %98 : vector<1x64x128xf32> to vector<64x128xf32>
    %100 = vector.shape_cast %97 : vector<64x128xf32> to vector<1x64x128xf32>
    tpu.vector_store %arg9[%c0_50, %c0_51, %c0_52], %100 {strides = array<i32>} : memref<8x64x128xf32, #tpu.memory_space<vmem>>, vector<1x64x128xf32>,
    %c1_53 = arith.constant 1 : index
    %101 = memref.load %arg5[%c1_53] : memref<32xf32, #tpu.memory_space<smem>>
    %c0_54 = arith.constant 0 : index
    %c0_55 = arith.constant 0 : index
    %c0_56 = arith.constant 0 : index
    %102 = vector.load %arg11[%c0_54, %c0_55, %c0_56] : memref<4x64x128xf32, #tpu.memory_space<vmem>>, vector<1x64x128xf32>
    %103 = vector.shape_cast %102 : vector<1x64x128xf32> to vector<64x128xf32>
    %104 = vector.broadcast %101 : f32 to vector<64x128xf32>
    %105 = arith.mulf %104, %103 : vector<64x128xf32>
    %c1_57 = arith.constant 1 : index
    %106 = memref.load %arg6[%c1_57] : memref<8xf32, #tpu.memory_space<smem>>
    %107 = vector.broadcast %106 : f32 to vector<64x128xf32>
    %108 = arith.addf %105, %107 : vector<64x128xf32>
    %c9 = arith.constant 9 : index
    %109 = memref.load %arg5[%c9] : memref<32xf32, #tpu.memory_space<smem>>
    %c1_58 = arith.constant 1 : index
    %c0_59 = arith.constant 0 : index
    %c0_60 = arith.constant 0 : index
    %110 = vector.load %arg11[%c1_58, %c0_59, %c0_60] : memref<4x64x128xf32, #tpu.memory_space<vmem>>, vector<1x64x128xf32>
    %111 = vector.shape_cast %110 : vector<1x64x128xf32> to vector<64x128xf32>
    %112 = vector.broadcast %109 : f32 to vector<64x128xf32>
    %113 = arith.mulf %112, %111 : vector<64x128xf32>
    %114 = arith.addf %108, %113 : vector<64x128xf32>
    %c17 = arith.constant 17 : index
    %115 = memref.load %arg5[%c17] : memref<32xf32, #tpu.memory_space<smem>>
    %c2_61 = arith.constant 2 : index
    %c0_62 = arith.constant 0 : index
    %c0_63 = arith.constant 0 : index
    %116 = vector.load %arg11[%c2_61, %c0_62, %c0_63] : memref<4x64x128xf32, #tpu.memory_space<vmem>>, vector<1x64x128xf32>
    %117 = vector.shape_cast %116 : vector<1x64x128xf32> to vector<64x128xf32>
    %118 = vector.broadcast %115 : f32 to vector<64x128xf32>
    %119 = arith.mulf %118, %117 : vector<64x128xf32>
    %120 = arith.addf %114, %119 : vector<64x128xf32>
    %c25 = arith.constant 25 : index
    %121 = memref.load %arg5[%c25] : memref<32xf32, #tpu.memory_space<smem>>
    %c3_64 = arith.constant 3 : index
    %c0_65 = arith.constant 0 : index
    %c0_66 = arith.constant 0 : index
    %122 = vector.load %arg11[%c3_64, %c0_65, %c0_66] : memref<4x64x128xf32, #tpu.memory_space<vmem>>, vector<1x64x128xf32>
    %123 = vector.shape_cast %122 : vector<1x64x128xf32> to vector<64x128xf32>
    %124 = vector.broadcast %121 : f32 to vector<64x128xf32>
    %125 = arith.mulf %124, %123 : vector<64x128xf32>
    %126 = arith.addf %120, %125 : vector<64x128xf32>
    %cst_67 = arith.constant 0.000000e+00 : f32
    %127 = vector.broadcast %cst_67 : f32 to vector<64x128xf32>
    %128 = arith.maximumf %126, %127 : vector<64x128xf32>
    %c1_68 = arith.constant 1 : index
    %c0_69 = arith.constant 0 : index
    %c0_70 = arith.constant 0 : index
    %129 = vector.load %arg9[%c1_68, %c0_69, %c0_70] : memref<8x64x128xf32, #tpu.memory_space<vmem>>, vector<1x64x128xf32>
    %130 = vector.shape_cast %129 : vector<1x64x128xf32> to vector<64x128xf32>
    %131 = vector.shape_cast %128 : vector<64x128xf32> to vector<1x64x128xf32>
    tpu.vector_store %arg9[%c1_68, %c0_69, %c0_70], %131 {strides = array<i32>} : memref<8x64x128xf32, #tpu.memory_space<vmem>>, vector<1x64x128xf32>,
    %c2_71 = arith.constant 2 : index
    %132 = memref.load %arg5[%c2_71] : memref<32xf32, #tpu.memory_space<smem>>
    %c0_72 = arith.constant 0 : index
    %c0_73 = arith.constant 0 : index
    %c0_74 = arith.constant 0 : index
    %133 = vector.load %arg11[%c0_72, %c0_73, %c0_74] : memref<4x64x128xf32, #tpu.memory_space<vmem>>, vector<1x64x128xf32>
    %134 = vector.shape_cast %133 : vector<1x64x128xf32> to vector<64x128xf32>
    %135 = vector.broadcast %132 : f32 to vector<64x128xf32>
    %136 = arith.mulf %135, %134 : vector<64x128xf32>
    %c2_75 = arith.constant 2 : index
    %137 = memref.load %arg6[%c2_75] : memref<8xf32, #tpu.memory_space<smem>>
    %138 = vector.broadcast %137 : f32 to vector<64x128xf32>
    %139 = arith.addf %136, %138 : vector<64x128xf32>
    %c10 = arith.constant 10 : index
    %140 = memref.load %arg5[%c10] : memref<32xf32, #tpu.memory_space<smem>>
    %c1_76 = arith.constant 1 : index
    %c0_77 = arith.constant 0 : index
    %c0_78 = arith.constant 0 : index
    %141 = vector.load %arg11[%c1_76, %c0_77, %c0_78] : memref<4x64x128xf32, #tpu.memory_space<vmem>>, vector<1x64x128xf32>
    %142 = vector.shape_cast %141 : vector<1x64x128xf32> to vector<64x128xf32>
    %143 = vector.broadcast %140 : f32 to vector<64x128xf32>
    %144 = arith.mulf %143, %142 : vector<64x128xf32>
    %145 = arith.addf %139, %144 : vector<64x128xf32>
    %c18 = arith.constant 18 : index
    %146 = memref.load %arg5[%c18] : memref<32xf32, #tpu.memory_space<smem>>
    %c2_79 = arith.constant 2 : index
    %c0_80 = arith.constant 0 : index
    %c0_81 = arith.constant 0 : index
    %147 = vector.load %arg11[%c2_79, %c0_80, %c0_81] : memref<4x64x128xf32, #tpu.memory_space<vmem>>, vector<1x64x128xf32>
    %148 = vector.shape_cast %147 : vector<1x64x128xf32> to vector<64x128xf32>
    %149 = vector.broadcast %146 : f32 to vector<64x128xf32>
    %150 = arith.mulf %149, %148 : vector<64x128xf32>
    %151 = arith.addf %145, %150 : vector<64x128xf32>
    %c26 = arith.constant 26 : index
    %152 = memref.load %arg5[%c26] : memref<32xf32, #tpu.memory_space<smem>>
    %c3_82 = arith.constant 3 : index
    %c0_83 = arith.constant 0 : index
    %c0_84 = arith.constant 0 : index
    %153 = vector.load %arg11[%c3_82, %c0_83, %c0_84] : memref<4x64x128xf32, #tpu.memory_space<vmem>>, vector<1x64x128xf32>
    %154 = vector.shape_cast %153 : vector<1x64x128xf32> to vector<64x128xf32>
    %155 = vector.broadcast %152 : f32 to vector<64x128xf32>
    %156 = arith.mulf %155, %154 : vector<64x128xf32>
    %157 = arith.addf %151, %156 : vector<64x128xf32>
    %cst_85 = arith.constant 0.000000e+00 : f32
    %158 = vector.broadcast %cst_85 : f32 to vector<64x128xf32>
    %159 = arith.maximumf %157, %158 : vector<64x128xf32>
    %c2_86 = arith.constant 2 : index
    %c0_87 = arith.constant 0 : index
    %c0_88 = arith.constant 0 : index
    %160 = vector.load %arg9[%c2_86, %c0_87, %c0_88] : memref<8x64x128xf32, #tpu.memory_space<vmem>>, vector<1x64x128xf32>
    %161 = vector.shape_cast %160 : vector<1x64x128xf32> to vector<64x128xf32>
    %162 = vector.shape_cast %159 : vector<64x128xf32> to vector<1x64x128xf32>
    tpu.vector_store %arg9[%c2_86, %c0_87, %c0_88], %162 {strides = array<i32>} : memref<8x64x128xf32, #tpu.memory_space<vmem>>, vector<1x64x128xf32>,
    %c3_89 = arith.constant 3 : index
    %163 = memref.load %arg5[%c3_89] : memref<32xf32, #tpu.memory_space<smem>>
    %c0_90 = arith.constant 0 : index
    %c0_91 = arith.constant 0 : index
    %c0_92 = arith.constant 0 : index
    %164 = vector.load %arg11[%c0_90, %c0_91, %c0_92] : memref<4x64x128xf32, #tpu.memory_space<vmem>>, vector<1x64x128xf32>
    %165 = vector.shape_cast %164 : vector<1x64x128xf32> to vector<64x128xf32>
    %166 = vector.broadcast %163 : f32 to vector<64x128xf32>
    %167 = arith.mulf %166, %165 : vector<64x128xf32>
    %c3_93 = arith.constant 3 : index
    %168 = memref.load %arg6[%c3_93] : memref<8xf32, #tpu.memory_space<smem>>
    %169 = vector.broadcast %168 : f32 to vector<64x128xf32>
    %170 = arith.addf %167, %169 : vector<64x128xf32>
    %c11 = arith.constant 11 : index
    %171 = memref.load %arg5[%c11] : memref<32xf32, #tpu.memory_space<smem>>
    %c1_94 = arith.constant 1 : index
    %c0_95 = arith.constant 0 : index
    %c0_96 = arith.constant 0 : index
    %172 = vector.load %arg11[%c1_94, %c0_95, %c0_96] : memref<4x64x128xf32, #tpu.memory_space<vmem>>, vector<1x64x128xf32>
    %173 = vector.shape_cast %172 : vector<1x64x128xf32> to vector<64x128xf32>
    %174 = vector.broadcast %171 : f32 to vector<64x128xf32>
    %175 = arith.mulf %174, %173 : vector<64x128xf32>
    %176 = arith.addf %170, %175 : vector<64x128xf32>
    %c19 = arith.constant 19 : index
    %177 = memref.load %arg5[%c19] : memref<32xf32, #tpu.memory_space<smem>>
    %c2_97 = arith.constant 2 : index
    %c0_98 = arith.constant 0 : index
    %c0_99 = arith.constant 0 : index
    %178 = vector.load %arg11[%c2_97, %c0_98, %c0_99] : memref<4x64x128xf32, #tpu.memory_space<vmem>>, vector<1x64x128xf32>
    %179 = vector.shape_cast %178 : vector<1x64x128xf32> to vector<64x128xf32>
    %180 = vector.broadcast %177 : f32 to vector<64x128xf32>
    %181 = arith.mulf %180, %179 : vector<64x128xf32>
    %182 = arith.addf %176, %181 : vector<64x128xf32>
    %c27 = arith.constant 27 : index
    %183 = memref.load %arg5[%c27] : memref<32xf32, #tpu.memory_space<smem>>
    %c3_100 = arith.constant 3 : index
    %c0_101 = arith.constant 0 : index
    %c0_102 = arith.constant 0 : index
    %184 = vector.load %arg11[%c3_100, %c0_101, %c0_102] : memref<4x64x128xf32, #tpu.memory_space<vmem>>, vector<1x64x128xf32>
    %185 = vector.shape_cast %184 : vector<1x64x128xf32> to vector<64x128xf32>
    %186 = vector.broadcast %183 : f32 to vector<64x128xf32>
    %187 = arith.mulf %186, %185 : vector<64x128xf32>
    %188 = arith.addf %182, %187 : vector<64x128xf32>
    %cst_103 = arith.constant 0.000000e+00 : f32
    %189 = vector.broadcast %cst_103 : f32 to vector<64x128xf32>
    %190 = arith.maximumf %188, %189 : vector<64x128xf32>
    %c3_104 = arith.constant 3 : index
    %c0_105 = arith.constant 0 : index
    %c0_106 = arith.constant 0 : index
    %191 = vector.load %arg9[%c3_104, %c0_105, %c0_106] : memref<8x64x128xf32, #tpu.memory_space<vmem>>, vector<1x64x128xf32>
    %192 = vector.shape_cast %191 : vector<1x64x128xf32> to vector<64x128xf32>
    %193 = vector.shape_cast %190 : vector<64x128xf32> to vector<1x64x128xf32>
    tpu.vector_store %arg9[%c3_104, %c0_105, %c0_106], %193 {strides = array<i32>} : memref<8x64x128xf32, #tpu.memory_space<vmem>>, vector<1x64x128xf32>,
    %c4 = arith.constant 4 : index
    %194 = memref.load %arg5[%c4] : memref<32xf32, #tpu.memory_space<smem>>
    %c0_107 = arith.constant 0 : index
    %c0_108 = arith.constant 0 : index
    %c0_109 = arith.constant 0 : index
    %195 = vector.load %arg11[%c0_107, %c0_108, %c0_109] : memref<4x64x128xf32, #tpu.memory_space<vmem>>, vector<1x64x128xf32>
    %196 = vector.shape_cast %195 : vector<1x64x128xf32> to vector<64x128xf32>
    %197 = vector.broadcast %194 : f32 to vector<64x128xf32>
    %198 = arith.mulf %197, %196 : vector<64x128xf32>
    %c4_110 = arith.constant 4 : index
    %199 = memref.load %arg6[%c4_110] : memref<8xf32, #tpu.memory_space<smem>>
    %200 = vector.broadcast %199 : f32 to vector<64x128xf32>
    %201 = arith.addf %198, %200 : vector<64x128xf32>
    %c12 = arith.constant 12 : index
    %202 = memref.load %arg5[%c12] : memref<32xf32, #tpu.memory_space<smem>>
    %c1_111 = arith.constant 1 : index
    %c0_112 = arith.constant 0 : index
    %c0_113 = arith.constant 0 : index
    %203 = vector.load %arg11[%c1_111, %c0_112, %c0_113] : memref<4x64x128xf32, #tpu.memory_space<vmem>>, vector<1x64x128xf32>
    %204 = vector.shape_cast %203 : vector<1x64x128xf32> to vector<64x128xf32>
    %205 = vector.broadcast %202 : f32 to vector<64x128xf32>
    %206 = arith.mulf %205, %204 : vector<64x128xf32>
    %207 = arith.addf %201, %206 : vector<64x128xf32>
    %c20 = arith.constant 20 : index
    %208 = memref.load %arg5[%c20] : memref<32xf32, #tpu.memory_space<smem>>
    %c2_114 = arith.constant 2 : index
    %c0_115 = arith.constant 0 : index
    %c0_116 = arith.constant 0 : index
    %209 = vector.load %arg11[%c2_114, %c0_115, %c0_116] : memref<4x64x128xf32, #tpu.memory_space<vmem>>, vector<1x64x128xf32>
    %210 = vector.shape_cast %209 : vector<1x64x128xf32> to vector<64x128xf32>
    %211 = vector.broadcast %208 : f32 to vector<64x128xf32>
    %212 = arith.mulf %211, %210 : vector<64x128xf32>
    %213 = arith.addf %207, %212 : vector<64x128xf32>
    %c28 = arith.constant 28 : index
    %214 = memref.load %arg5[%c28] : memref<32xf32, #tpu.memory_space<smem>>
    %c3_117 = arith.constant 3 : index
    %c0_118 = arith.constant 0 : index
    %c0_119 = arith.constant 0 : index
    %215 = vector.load %arg11[%c3_117, %c0_118, %c0_119] : memref<4x64x128xf32, #tpu.memory_space<vmem>>, vector<1x64x128xf32>
    %216 = vector.shape_cast %215 : vector<1x64x128xf32> to vector<64x128xf32>
    %217 = vector.broadcast %214 : f32 to vector<64x128xf32>
    %218 = arith.mulf %217, %216 : vector<64x128xf32>
    %219 = arith.addf %213, %218 : vector<64x128xf32>
    %cst_120 = arith.constant 0.000000e+00 : f32
    %220 = vector.broadcast %cst_120 : f32 to vector<64x128xf32>
    %221 = arith.maximumf %219, %220 : vector<64x128xf32>
    %c4_121 = arith.constant 4 : index
    %c0_122 = arith.constant 0 : index
    %c0_123 = arith.constant 0 : index
    %222 = vector.load %arg9[%c4_121, %c0_122, %c0_123] : memref<8x64x128xf32, #tpu.memory_space<vmem>>, vector<1x64x128xf32>
    %223 = vector.shape_cast %222 : vector<1x64x128xf32> to vector<64x128xf32>
    %224 = vector.shape_cast %221 : vector<64x128xf32> to vector<1x64x128xf32>
    tpu.vector_store %arg9[%c4_121, %c0_122, %c0_123], %224 {strides = array<i32>} : memref<8x64x128xf32, #tpu.memory_space<vmem>>, vector<1x64x128xf32>,
    %c5 = arith.constant 5 : index
    %225 = memref.load %arg5[%c5] : memref<32xf32, #tpu.memory_space<smem>>
    %c0_124 = arith.constant 0 : index
    %c0_125 = arith.constant 0 : index
    %c0_126 = arith.constant 0 : index
    %226 = vector.load %arg11[%c0_124, %c0_125, %c0_126] : memref<4x64x128xf32, #tpu.memory_space<vmem>>, vector<1x64x128xf32>
    %227 = vector.shape_cast %226 : vector<1x64x128xf32> to vector<64x128xf32>
    %228 = vector.broadcast %225 : f32 to vector<64x128xf32>
    %229 = arith.mulf %228, %227 : vector<64x128xf32>
    %c5_127 = arith.constant 5 : index
    %230 = memref.load %arg6[%c5_127] : memref<8xf32, #tpu.memory_space<smem>>
    %231 = vector.broadcast %230 : f32 to vector<64x128xf32>
    %232 = arith.addf %229, %231 : vector<64x128xf32>
    %c13 = arith.constant 13 : index
    %233 = memref.load %arg5[%c13] : memref<32xf32, #tpu.memory_space<smem>>
    %c1_128 = arith.constant 1 : index
    %c0_129 = arith.constant 0 : index
    %c0_130 = arith.constant 0 : index
    %234 = vector.load %arg11[%c1_128, %c0_129, %c0_130] : memref<4x64x128xf32, #tpu.memory_space<vmem>>, vector<1x64x128xf32>
    %235 = vector.shape_cast %234 : vector<1x64x128xf32> to vector<64x128xf32>
    %236 = vector.broadcast %233 : f32 to vector<64x128xf32>
    %237 = arith.mulf %236, %235 : vector<64x128xf32>
    %238 = arith.addf %232, %237 : vector<64x128xf32>
    %c21 = arith.constant 21 : index
    %239 = memref.load %arg5[%c21] : memref<32xf32, #tpu.memory_space<smem>>
    %c2_131 = arith.constant 2 : index
    %c0_132 = arith.constant 0 : index
    %c0_133 = arith.constant 0 : index
    %240 = vector.load %arg11[%c2_131, %c0_132, %c0_133] : memref<4x64x128xf32, #tpu.memory_space<vmem>>, vector<1x64x128xf32>
    %241 = vector.shape_cast %240 : vector<1x64x128xf32> to vector<64x128xf32>
    %242 = vector.broadcast %239 : f32 to vector<64x128xf32>
    %243 = arith.mulf %242, %241 : vector<64x128xf32>
    %244 = arith.addf %238, %243 : vector<64x128xf32>
    %c29 = arith.constant 29 : index
    %245 = memref.load %arg5[%c29] : memref<32xf32, #tpu.memory_space<smem>>
    %c3_134 = arith.constant 3 : index
    %c0_135 = arith.constant 0 : index
    %c0_136 = arith.constant 0 : index
    %246 = vector.load %arg11[%c3_134, %c0_135, %c0_136] : memref<4x64x128xf32, #tpu.memory_space<vmem>>, vector<1x64x128xf32>
    %247 = vector.shape_cast %246 : vector<1x64x128xf32> to vector<64x128xf32>
    %248 = vector.broadcast %245 : f32 to vector<64x128xf32>
    %249 = arith.mulf %248, %247 : vector<64x128xf32>
    %250 = arith.addf %244, %249 : vector<64x128xf32>
    %cst_137 = arith.constant 0.000000e+00 : f32
    %251 = vector.broadcast %cst_137 : f32 to vector<64x128xf32>
    %252 = arith.maximumf %250, %251 : vector<64x128xf32>
    %c5_138 = arith.constant 5 : index
    %c0_139 = arith.constant 0 : index
    %c0_140 = arith.constant 0 : index
    %253 = vector.load %arg9[%c5_138, %c0_139, %c0_140] : memref<8x64x128xf32, #tpu.memory_space<vmem>>, vector<1x64x128xf32>
    %254 = vector.shape_cast %253 : vector<1x64x128xf32> to vector<64x128xf32>
    %255 = vector.shape_cast %252 : vector<64x128xf32> to vector<1x64x128xf32>
    tpu.vector_store %arg9[%c5_138, %c0_139, %c0_140], %255 {strides = array<i32>} : memref<8x64x128xf32, #tpu.memory_space<vmem>>, vector<1x64x128xf32>,
    %c6 = arith.constant 6 : index
    %256 = memref.load %arg5[%c6] : memref<32xf32, #tpu.memory_space<smem>>
    %c0_141 = arith.constant 0 : index
    %c0_142 = arith.constant 0 : index
    %c0_143 = arith.constant 0 : index
    %257 = vector.load %arg11[%c0_141, %c0_142, %c0_143] : memref<4x64x128xf32, #tpu.memory_space<vmem>>, vector<1x64x128xf32>
    %258 = vector.shape_cast %257 : vector<1x64x128xf32> to vector<64x128xf32>
    %259 = vector.broadcast %256 : f32 to vector<64x128xf32>
    %260 = arith.mulf %259, %258 : vector<64x128xf32>
    %c6_144 = arith.constant 6 : index
    %261 = memref.load %arg6[%c6_144] : memref<8xf32, #tpu.memory_space<smem>>
    %262 = vector.broadcast %261 : f32 to vector<64x128xf32>
    %263 = arith.addf %260, %262 : vector<64x128xf32>
    %c14 = arith.constant 14 : index
    %264 = memref.load %arg5[%c14] : memref<32xf32, #tpu.memory_space<smem>>
    %c1_145 = arith.constant 1 : index
    %c0_146 = arith.constant 0 : index
    %c0_147 = arith.constant 0 : index
    %265 = vector.load %arg11[%c1_145, %c0_146, %c0_147] : memref<4x64x128xf32, #tpu.memory_space<vmem>>, vector<1x64x128xf32>
    %266 = vector.shape_cast %265 : vector<1x64x128xf32> to vector<64x128xf32>
    %267 = vector.broadcast %264 : f32 to vector<64x128xf32>
    %268 = arith.mulf %267, %266 : vector<64x128xf32>
    %269 = arith.addf %263, %268 : vector<64x128xf32>
    %c22 = arith.constant 22 : index
    %270 = memref.load %arg5[%c22] : memref<32xf32, #tpu.memory_space<smem>>
    %c2_148 = arith.constant 2 : index
    %c0_149 = arith.constant 0 : index
    %c0_150 = arith.constant 0 : index
    %271 = vector.load %arg11[%c2_148, %c0_149, %c0_150] : memref<4x64x128xf32, #tpu.memory_space<vmem>>, vector<1x64x128xf32>
    %272 = vector.shape_cast %271 : vector<1x64x128xf32> to vector<64x128xf32>
    %273 = vector.broadcast %270 : f32 to vector<64x128xf32>
    %274 = arith.mulf %273, %272 : vector<64x128xf32>
    %275 = arith.addf %269, %274 : vector<64x128xf32>
    %c30 = arith.constant 30 : index
    %276 = memref.load %arg5[%c30] : memref<32xf32, #tpu.memory_space<smem>>
    %c3_151 = arith.constant 3 : index
    %c0_152 = arith.constant 0 : index
    %c0_153 = arith.constant 0 : index
    %277 = vector.load %arg11[%c3_151, %c0_152, %c0_153] : memref<4x64x128xf32, #tpu.memory_space<vmem>>, vector<1x64x128xf32>
    %278 = vector.shape_cast %277 : vector<1x64x128xf32> to vector<64x128xf32>
    %279 = vector.broadcast %276 : f32 to vector<64x128xf32>
    %280 = arith.mulf %279, %278 : vector<64x128xf32>
    %281 = arith.addf %275, %280 : vector<64x128xf32>
    %cst_154 = arith.constant 0.000000e+00 : f32
    %282 = vector.broadcast %cst_154 : f32 to vector<64x128xf32>
    %283 = arith.maximumf %281, %282 : vector<64x128xf32>
    %c6_155 = arith.constant 6 : index
    %c0_156 = arith.constant 0 : index
    %c0_157 = arith.constant 0 : index
    %284 = vector.load %arg9[%c6_155, %c0_156, %c0_157] : memref<8x64x128xf32, #tpu.memory_space<vmem>>, vector<1x64x128xf32>
    %285 = vector.shape_cast %284 : vector<1x64x128xf32> to vector<64x128xf32>
    %286 = vector.shape_cast %283 : vector<64x128xf32> to vector<1x64x128xf32>
    tpu.vector_store %arg9[%c6_155, %c0_156, %c0_157], %286 {strides = array<i32>} : memref<8x64x128xf32, #tpu.memory_space<vmem>>, vector<1x64x128xf32>,
    %c7 = arith.constant 7 : index
    %287 = memref.load %arg5[%c7] : memref<32xf32, #tpu.memory_space<smem>>
    %c0_158 = arith.constant 0 : index
    %c0_159 = arith.constant 0 : index
    %c0_160 = arith.constant 0 : index
    %288 = vector.load %arg11[%c0_158, %c0_159, %c0_160] : memref<4x64x128xf32, #tpu.memory_space<vmem>>, vector<1x64x128xf32>
    %289 = vector.shape_cast %288 : vector<1x64x128xf32> to vector<64x128xf32>
    %290 = vector.broadcast %287 : f32 to vector<64x128xf32>
    %291 = arith.mulf %290, %289 : vector<64x128xf32>
    %c7_161 = arith.constant 7 : index
    %292 = memref.load %arg6[%c7_161] : memref<8xf32, #tpu.memory_space<smem>>
    %293 = vector.broadcast %292 : f32 to vector<64x128xf32>
    %294 = arith.addf %291, %293 : vector<64x128xf32>
    %c15 = arith.constant 15 : index
    %295 = memref.load %arg5[%c15] : memref<32xf32, #tpu.memory_space<smem>>
    %c1_162 = arith.constant 1 : index
    %c0_163 = arith.constant 0 : index
    %c0_164 = arith.constant 0 : index
    %296 = vector.load %arg11[%c1_162, %c0_163, %c0_164] : memref<4x64x128xf32, #tpu.memory_space<vmem>>, vector<1x64x128xf32>
    %297 = vector.shape_cast %296 : vector<1x64x128xf32> to vector<64x128xf32>
    %298 = vector.broadcast %295 : f32 to vector<64x128xf32>
    %299 = arith.mulf %298, %297 : vector<64x128xf32>
    %300 = arith.addf %294, %299 : vector<64x128xf32>
    %c23 = arith.constant 23 : index
    %301 = memref.load %arg5[%c23] : memref<32xf32, #tpu.memory_space<smem>>
    %c2_165 = arith.constant 2 : index
    %c0_166 = arith.constant 0 : index
    %c0_167 = arith.constant 0 : index
    %302 = vector.load %arg11[%c2_165, %c0_166, %c0_167] : memref<4x64x128xf32, #tpu.memory_space<vmem>>, vector<1x64x128xf32>
    %303 = vector.shape_cast %302 : vector<1x64x128xf32> to vector<64x128xf32>
    %304 = vector.broadcast %301 : f32 to vector<64x128xf32>
    %305 = arith.mulf %304, %303 : vector<64x128xf32>
    %306 = arith.addf %300, %305 : vector<64x128xf32>
    %c31 = arith.constant 31 : index
    %307 = memref.load %arg5[%c31] : memref<32xf32, #tpu.memory_space<smem>>
    %c3_168 = arith.constant 3 : index
    %c0_169 = arith.constant 0 : index
    %c0_170 = arith.constant 0 : index
    %308 = vector.load %arg11[%c3_168, %c0_169, %c0_170] : memref<4x64x128xf32, #tpu.memory_space<vmem>>, vector<1x64x128xf32>
    %309 = vector.shape_cast %308 : vector<1x64x128xf32> to vector<64x128xf32>
    %310 = vector.broadcast %307 : f32 to vector<64x128xf32>
    %311 = arith.mulf %310, %309 : vector<64x128xf32>
    %312 = arith.addf %306, %311 : vector<64x128xf32>
    %cst_171 = arith.constant 0.000000e+00 : f32
    %313 = vector.broadcast %cst_171 : f32 to vector<64x128xf32>
    %314 = arith.maximumf %312, %313 : vector<64x128xf32>
    %c7_172 = arith.constant 7 : index
    %c0_173 = arith.constant 0 : index
    %c0_174 = arith.constant 0 : index
    %315 = vector.load %arg9[%c7_172, %c0_173, %c0_174] : memref<8x64x128xf32, #tpu.memory_space<vmem>>, vector<1x64x128xf32>
    %316 = vector.shape_cast %315 : vector<1x64x128xf32> to vector<64x128xf32>
    %317 = vector.shape_cast %314 : vector<64x128xf32> to vector<1x64x128xf32>
    tpu.vector_store %arg9[%c7_172, %c0_173, %c0_174], %317 {strides = array<i32>} : memref<8x64x128xf32, #tpu.memory_space<vmem>>, vector<1x64x128xf32>,
    %c0_175 = arith.constant 0 : index
    %c0_176 = arith.constant 0 : index
    %318 = vector.load %arg12[%c0_175, %c0_176] : memref<64x4xf32, #tpu.memory_space<vmem>>, vector<64x4xf32>
    %c0_177 = arith.constant 0 : index
    %c0_178 = arith.constant 0 : index
    %319 = vector.load %arg7[%c0_177, %c0_178] : memref<4x32xf32, #tpu.memory_space<vmem>>, vector<4x32xf32>
    %cst_179 = arith.constant dense<0.000000e+00> : vector<64x32xf32>
    %320 = tpu.matmul %318, %319, %cst_179 {dimension_numbers = #tpu.dot_dimension_numbers<[1], [0], [0], [1], [0, 0, 1, 1], [], []>} : vector<64x4xf32>, vector<4x32xf32>, vector<64x32xf32> -> vector<64x32xf32>
    %c0_180 = arith.constant 0 : index
    %c0_181 = arith.constant 0 : index
    %321 = vector.load %arg8[%c0_180, %c0_181] : memref<1x32xf32, #tpu.memory_space<vmem>>, vector<1x32xf32>
    %322 = vector.broadcast %321 : vector<1x32xf32> to vector<64x32xf32>
    %323 = arith.addf %320, %322 : vector<64x32xf32>
    %c0_182 = arith.constant 0 : index
    %c0_183 = arith.constant 0 : index
    %324 = vector.load %arg10[%c0_182, %c0_183] : memref<64x32xf32, #tpu.memory_space<vmem>>, vector<64x32xf32>
    tpu.vector_store %arg10[%c0_182, %c0_183], %323 {strides = array<i32>} : memref<64x32xf32, #tpu.memory_space<vmem>>, vector<64x32xf32>,
    return
  }
  func.func @transform_0(%arg0: i32) -> (i32, i32) {
    %c0_i32 = arith.constant 0 : i32
    %c0_i32_0 = arith.constant 0 : i32
    return %arg0, %c0_i32 : i32, i32
  }
  func.func @transform_1(%arg0: i32) -> (i32, i32) {
    %c0_i32 = arith.constant 0 : i32
    %c0_i32_0 = arith.constant 0 : i32
    %c0_i32_1 = arith.constant 0 : i32
    return %c0_i32, %c0_i32_0 : i32, i32
  }
  func.func @transform_2(%arg0: i32) -> i32 {
    %c0_i32 = arith.constant 0 : i32
    %c0_i32_0 = arith.constant 0 : i32
    return %c0_i32 : i32
  }
  func.func @transform_3(%arg0: i32) -> i32 {
    %c0_i32 = arith.constant 0 : i32
    %c0_i32_0 = arith.constant 0 : i32
    return %c0_i32 : i32
  }
  func.func @transform_4(%arg0: i32) -> i32 {
    %c0_i32 = arith.constant 0 : i32
    %c0_i32_0 = arith.constant 0 : i32
    return %c0_i32 : i32
  }
  func.func @transform_5(%arg0: i32) -> i32 {
    %c0_i32 = arith.constant 0 : i32
    %c0_i32_0 = arith.constant 0 : i32
    return %c0_i32 : i32
  }
  func.func @transform_6(%arg0: i32) -> (i32, i32) {
    %c0_i32 = arith.constant 0 : i32
    %c0_i32_0 = arith.constant 0 : i32
    %c0_i32_1 = arith.constant 0 : i32
    return %c0_i32, %c0_i32_0 : i32, i32
  }
  func.func @transform_7(%arg0: i32) -> (i32, i32) {
    %c0_i32 = arith.constant 0 : i32
    %c0_i32_0 = arith.constant 0 : i32
    %c0_i32_1 = arith.constant 0 : i32
    return %c0_i32, %c0_i32_0 : i32, i32
  }
  func.func @transform_8(%arg0: i32) -> (i32, i32, i32) {
    %c0_i32 = arith.constant 0 : i32
    %c0_i32_0 = arith.constant 0 : i32
    %c0_i32_1 = arith.constant 0 : i32
    return %c0_i32, %arg0, %c0_i32_0 : i32, i32, i32
  }
  func.func @transform_9(%arg0: i32) -> (i32, i32) {
    %c0_i32 = arith.constant 0 : i32
    %c0_i32_0 = arith.constant 0 : i32
    return %arg0, %c0_i32 : i32, i32
  }
}

</mosaic_0001>

<llo_original>
// kernel: tpu_custom_call.1
$region0: #{tpu_custom_call.1}
  #allocation0 [shape = 'u32[]', space=smem, size = 0x4, offset = 0x4, fixed_abs, tag = 'smem constant byte address 0x4 - core index']
  #allocation1 [shape = 'u32[72,128]{1,0:T(1,128)}', space=vmem, size = 0x9000, scoped, tag = 'internal scratch']
  #allocation2 [shape = 'f32[4,64,128]{2,1,0:T(8,128)}', space=vmem, size = 0x20000, scoped, tag = 'scratch operand']
  #allocation3 [shape = 'f32[64,4]{1,0:T(8,128)}', space=vmem, size = 0x8000, scoped, tag = 'scratch operand']
  #allocation13 [shape = 's32[]', space=sflag, size = 0x4, offset = 0, fixed_abs, tag = 'sflag constant byte address 0x0 - dummy sync flag']
  %s0 = inlined_call_operand.vmem [shape: f32[128,2], index: 0, kind: input, shape index: {}]
  %s1 = inlined_call_operand.vmem [shape: f32[2,128], index: 1, kind: input, shape index: {}]
  %s2 = inlined_call_operand.vmem [shape: f32[4], index: 2, kind: input, shape index: {}]
  %s3 = inlined_call_operand.vmem [shape: f32[4], index: 3, kind: input, shape index: {}]
  %s4 = inlined_call_operand.vmem [shape: f32[32], index: 4, kind: input, shape index: {}]
  %s5 = inlined_call_operand.vmem [shape: f32[8], index: 5, kind: input, shape index: {}]
  %s6 = inlined_call_operand.vmem [shape: f32[4,32], index: 6, kind: input, shape index: {}]
  %s7 = inlined_call_operand.vmem [shape: f32[1,32], index: 7, kind: input, shape index: {}]
  %s8 = inlined_call_operand.hbm [shape: f32[8,128,128], index: 8, kind: output, shape index: {0}]
  %s9 = inlined_call_operand.vmem [shape: f32[128,32], index: 9, kind: output, shape index: {1}]
  %10 = xla_tuple %s8, %s9
  %s11 = sld [smem:[#allocation0]]
  $region89: #{tpu_custom_call.1} parent=0
    _
  %s13 = ssub.s32 1, %s11
  %s14 = scalar_select 0, %s13, %s11
  $region1: #{tpu_custom_call.1} parent=0
    #allocation4 [shape = 'u8[512]{0}', space=smem, size = 0x200, scoped, tag = 'input window, operand 2, single buffered']
    #allocation5 [shape = 's32[2]{0}', space=sflag, size = 0x8, scoped, tag = 'scoped memory for tpu_custom_call.1']
    #allocation6 [shape = 's32[2]{0}', space=sflag, size = 0x8, scoped, tag = 'scoped memory for tpu_custom_call.1']
    #allocation7 [shape = 'u8[512]{0}', space=smem, size = 0x200, scoped, tag = 'input window, operand 3, single buffered']
    #allocation8 [shape = 's32[1]{0}', space=sflag, size = 0x4, scoped, tag = 'scoped memory for tpu_custom_call.1']
    #allocation9 [shape = 'u8[512]{0}', space=smem, size = 0x200, scoped, tag = 'input window, operand 4, single buffered']
    #allocation10 [shape = 'u8[512]{0}', space=smem, size = 0x200, scoped, tag = 'input window, operand 5, single buffered']
    #allocation11 [shape = 's32[1]{0}', space=sflag, size = 0x4, scoped, tag = 'scoped memory for tpu_custom_call.1']
    #allocation12 [shape = 'u8[524288]{0}', space=vmem, size = 0x80000, scoped, tag = 'output window, operand 0']
    %15 = vsyncpa [#allocation6], 0
    %16 = vsyncpa [#allocation8], 0
    %17 = vsyncpa [#allocation11], 0
    %18 = vsyncpa [#allocation5], 0
    %s19 = scalar_lea.sflag [#allocation5], 1
    %20 = vsyncpa %s19, 0
    loop: start=0, step=1, limit=4
    $region2: #{tpu_custom_call.1} parent=1 // loop_pre_header
      _
    $region3: #{tpu_custom_call.1} parent=1 // loop_header
      %s22 = sphi 0, %s26
      %p23 = scmp.ge.s32.totalorder %s22, 4
      %s32 = sphi 0, %s34
      %s35 = sphi 0, %s32
      %s36 = sphi 0, %s35
      %s52 = sphi 0, %s36
      %s56 = sphi 0, %s56
      %s58 = sphi 0, %s56
      %s59 = sphi 0, %s58
      %s73 = sphi 0, %s59
      %s77 = sphi 0, %s77
      %s79 = sphi 0, %s77
      %s80 = sphi 0, %s79
      %s94 = sphi 0, %s80
      %s98 = sphi 0, %s98
      %s100 = sphi 0, %s98
      %s101 = sphi 0, %s100
      %s115 = sphi 0, %s101
      %s119 = sphi 0, %s119
      %s121 = sphi 0, %s119
      %s122 = sphi 0, %s121
      %s136 = sphi 0, %s122
      %s140 = sphi 0, %s140
      %s142 = sphi 0, %s140
      %s143 = sphi 0, %s142
      %s157 = sphi 0, %s143
      %s161 = sphi 0, %s161
      %s163 = sphi 0, %s161
      %s164 = sphi 0, %s163
      %s178 = sphi 0, %s164
      %s182 = sphi 0, %s182
      %s184 = sphi 0, %s182
      %s185 = sphi 0, %s184
      %s199 = sphi 0, %s185
      %s205 = sphi 0, %s207
      %s208 = sphi 0, %s205
      %s209 = sphi 0, %s208
      %s225 = sphi 0, %s209
      %s231 = sphi 0, %s233
      %s234 = sphi 0, %s231
      %s235 = sphi 0, %s234
      %s251 = sphi 0, %s235
    $region4: #{tpu_custom_call.1} parent=1 // loop_header_branch
      %25 = sbr.rel (%p23) target = $region8
    $region5: #{tpu_custom_call.1} parent=1 // loop_body
      %s27 = ssub.s32 %s22, 1
      %s28 = ssub.s32 %s22, 2
      %s29 = sadd.s32 %s22, 1
      %s30 = ssub.s32 %s22, %s29
      %p31 = scmp.eq.s32.totalorder %s30, 0
      %s33 = sadd.s32 %s32, 1
      %s34 = scalar_select %p31, %s32, %s33
      %p37 = pneg %p31
      %p38 = scmp.eq.s32.totalorder %s22, 1
      %p39 = por %p37, %p38
      %p40 = scmp.ne.s32.totalorder %s32, %s35
      %p41 = scmp.eq.s32.totalorder %s22, 0
      %p42 = por %p40, %p41
      %p43 = scmp.ne.s32.totalorder %s32, %s35
      %p44 = scmp.eq.s32.totalorder %s27, 1
      %p45 = por %p43, %p44
      %p46 = scmp.ne.s32.totalorder %s35, %s36
      %p47 = scmp.eq.s32.totalorder %s27, 0
      %p48 = por %p46, %p47
      %p49 = scmp.ne.s32.totalorder %s35, %s36
      %p50 = scmp.eq.s32.totalorder %s28, 1
      %p51 = por %p49, %p50
      %p53 = scmp.ne.s32.totalorder %s36, %s52
      %p54 = scmp.eq.s32.totalorder %s28, 0
      %p55 = por %p53, %p54
      %s57 = sadd.s32 %s56, 1
      %p60 = scmp.eq.s32.totalorder %s22, 1
      %p61 = scmp.ne.s32.totalorder %s56, %s58
      %p62 = scmp.eq.s32.totalorder %s22, 0
      %p63 = por %p61, %p62
      %p64 = scmp.ne.s32.totalorder %s56, %s58
      %p65 = scmp.eq.s32.totalorder %s27, 1
      %p66 = por %p64, %p65
      %p67 = scmp.ne.s32.totalorder %s58, %s59
      %p68 = scmp.eq.s32.totalorder %s27, 0
      %p69 = por %p67, %p68
      %p70 = scmp.ne.s32.totalorder %s58, %s59
      %p71 = scmp.eq.s32.totalorder %s28, 1
      %p72 = por %p70, %p71
      %p74 = scmp.ne.s32.totalorder %s59, %s73
      %p75 = scmp.eq.s32.totalorder %s28, 0
      %p76 = por %p74, %p75
      %s78 = sadd.s32 %s77, 1
      %p81 = scmp.eq.s32.totalorder %s22, 1
      %p82 = scmp.ne.s32.totalorder %s77, %s79
      %p83 = scmp.eq.s32.totalorder %s22, 0
      %p84 = por %p82, %p83
      %p85 = scmp.ne.s32.totalorder %s77, %s79
      %p86 = scmp.eq.s32.totalorder %s27, 1
      %p87 = por %p85, %p86
      %p88 = scmp.ne.s32.totalorder %s79, %s80
      %p89 = scmp.eq.s32.totalorder %s27, 0
      %p90 = por %p88, %p89
      %p91 = scmp.ne.s32.totalorder %s79, %s80
      %p92 = scmp.eq.s32.totalorder %s28, 1
      %p93 = por %p91, %p92
      %p95 = scmp.ne.s32.totalorder %s80, %s94
      %p96 = scmp.eq.s32.totalorder %s28, 0
      %p97 = por %p95, %p96
      %s99 = sadd.s32 %s98, 1
      %p102 = scmp.eq.s32.totalorder %s22, 1
      %p103 = scmp.ne.s32.totalorder %s98, %s100
      %p104 = scmp.eq.s32.totalorder %s22, 0
      %p105 = por %p103, %p104
      %p106 = scmp.ne.s32.totalorder %s98, %s100
      %p107 = scmp.eq.s32.totalorder %s27, 1
      %p108 = por %p106, %p107
      %p109 = scmp.ne.s32.totalorder %s100, %s101
      %p110 = scmp.eq.s32.totalorder %s27, 0
      %p111 = por %p109, %p110
      %p112 = scmp.ne.s32.totalorder %s100, %s101
      %p113 = scmp.eq.s32.totalorder %s28, 1
      %p114 = por %p112, %p113
      %p116 = scmp.ne.s32.totalorder %s101, %s115
      %p117 = scmp.eq.s32.totalorder %s28, 0
      %p118 = por %p116, %p117
      %s120 = sadd.s32 %s119, 1
      %p123 = scmp.eq.s32.totalorder %s22, 1
      %p124 = scmp.ne.s32.totalorder %s119, %s121
      %p125 = scmp.eq.s32.totalorder %s22, 0
      %p126 = por %p124, %p125
      %p127 = scmp.ne.s32.totalorder %s119, %s121
      %p128 = scmp.eq.s32.totalorder %s27, 1
      %p129 = por %p127, %p128
      %p130 = scmp.ne.s32.totalorder %s121, %s122
      %p131 = scmp.eq.s32.totalorder %s27, 0
      %p132 = por %p130, %p131
      %p133 = scmp.ne.s32.totalorder %s121, %s122
      %p134 = scmp.eq.s32.totalorder %s28, 1
      %p135 = por %p133, %p134
      %p137 = scmp.ne.s32.totalorder %s122, %s136
      %p138 = scmp.eq.s32.totalorder %s28, 0
      %p139 = por %p137, %p138
      %s141 = sadd.s32 %s140, 1
      %p144 = scmp.eq.s32.totalorder %s22, 1
      %p145 = scmp.ne.s32.totalorder %s140, %s142
      %p146 = scmp.eq.s32.totalorder %s22, 0
      %p147 = por %p145, %p146
      %p148 = scmp.ne.s32.totalorder %s140, %s142
      %p149 = scmp.eq.s32.totalorder %s27, 1
      %p150 = por %p148, %p149
      %p151 = scmp.ne.s32.totalorder %s142, %s143
      %p152 = scmp.eq.s32.totalorder %s27, 0
      %p153 = por %p151, %p152
      %p154 = scmp.ne.s32.totalorder %s142, %s143
      %p155 = scmp.eq.s32.totalorder %s28, 1
      %p156 = por %p154, %p155
      %p158 = scmp.ne.s32.totalorder %s143, %s157
      %p159 = scmp.eq.s32.totalorder %s28, 0
      %p160 = por %p158, %p159
      %s162 = sadd.s32 %s161, 1
      %p165 = scmp.eq.s32.totalorder %s22, 1
      %p166 = scmp.ne.s32.totalorder %s161, %s163
      %p167 = scmp.eq.s32.totalorder %s22, 0
      %p168 = por %p166, %p167
      %p169 = scmp.ne.s32.totalorder %s161, %s163
      %p170 = scmp.eq.s32.totalorder %s27, 1
      %p171 = por %p169, %p170
      %p172 = scmp.ne.s32.totalorder %s163, %s164
      %p173 = scmp.eq.s32.totalorder %s27, 0
      %p174 = por %p172, %p173
      %p175 = scmp.ne.s32.totalorder %s163, %s164
      %p176 = scmp.eq.s32.totalorder %s28, 1
      %p177 = por %p175, %p176
      %p179 = scmp.ne.s32.totalorder %s164, %s178
      %p180 = scmp.eq.s32.totalorder %s28, 0
      %p181 = por %p179, %p180
      %s183 = sadd.s32 %s182, 1
      %p186 = scmp.eq.s32.totalorder %s22, 1
      %p187 = scmp.ne.s32.totalorder %s182, %s184
      %p188 = scmp.eq.s32.totalorder %s22, 0
      %p189 = por %p187, %p188
      %p190 = scmp.ne.s32.totalorder %s182, %s184
      %p191 = scmp.eq.s32.totalorder %s27, 1
      %p192 = por %p190, %p191
      %p193 = scmp.ne.s32.totalorder %s184, %s185
      %p194 = scmp.eq.s32.totalorder %s27, 0
      %p195 = por %p193, %p194
      %p196 = scmp.ne.s32.totalorder %s184, %s185
      %p197 = scmp.eq.s32.totalorder %s28, 1
      %p198 = por %p196, %p197
      %p200 = scmp.ne.s32.totalorder %s185, %s199
      %p201 = scmp.eq.s32.totalorder %s28, 0
      %p202 = por %p200, %p201
      %s203 = ssub.s32 %s22, %s29
      %p204 = scmp.eq.s32.totalorder %s203, 0
      %s206 = sadd.s32 %s205, 1
      %s207 = scalar_select %p204, %s205, %s206
      %p210 = pneg %p204
      %p211 = scmp.eq.s32.totalorder %s22, 1
      %p212 = por %p210, %p211
      %p213 = scmp.ne.s32.totalorder %s205, %s208
      %p214 = scmp.eq.s32.totalorder %s22, 0
      %p215 = por %p213, %p214
      %p216 = scmp.ne.s32.totalorder %s205, %s208
      %p217 = scmp.eq.s32.totalorder %s27, 1
      %p218 = por %p216, %p217
      %p219 = scmp.ne.s32.totalorder %s208, %s209
      %p220 = scmp.eq.s32.totalorder %s27, 0
      %p221 = por %p219, %p220
      %p222 = scmp.ne.s32.totalorder %s208, %s209
      %p223 = scmp.eq.s32.totalorder %s28, 1
      %p224 = por %p222, %p223
      %p226 = scmp.ne.s32.totalorder %s209, %s225
      %p227 = scmp.eq.s32.totalorder %s28, 0
      %p228 = por %p226, %p227
      %s229 = ssub.s32 %s22, %s29
      %p230 = scmp.eq.s32.totalorder %s229, 0
      %s232 = sadd.s32 %s231, 1
      %s233 = scalar_select %p230, %s231, %s232
      %p236 = pneg %p230
      %p237 = scmp.eq.s32.totalorder %s22, 1
      %p238 = por %p236, %p237
      %p239 = scmp.ne.s32.totalorder %s231, %s234
      %p240 = scmp.eq.s32.totalorder %s22, 0
      %p241 = por %p239, %p240
      %p242 = scmp.ne.s32.totalorder %s231, %s234
      %p243 = scmp.eq.s32.totalorder %s27, 1
      %p244 = por %p242, %p243
      %p245 = scmp.ne.s32.totalorder %s234, %s235
      %p246 = scmp.eq.s32.totalorder %s27, 0
      %p247 = por %p245, %p246
      %p248 = scmp.ne.s32.totalorder %s234, %s235
      %p249 = scmp.eq.s32.totalorder %s28, 1
      %p250 = por %p248, %p249
      %p252 = scmp.ne.s32.totalorder %s235, %s251
      %p253 = scmp.eq.s32.totalorder %s28, 0
      %p254 = por %p252, %p253
      %p255 = scmp.le.s32.totalorder 1, %s22
      %p256 = scmp.lt.s32.totalorder %s22, 3
      %p257 = pnand %p255, %p256
      %p258 = pneg %p257
      // Predicated region
      $region9: #{tpu_custom_call.1} parent=5 // pred_check
        _
      $region10: #{tpu_custom_call.1} parent=5 // pred_check_branch
        %260 = sbr.rel (%p257) target = $region12
      $region11: #{tpu_custom_call.1} parent=5 // pred_region
        %s261 = ssub.s32 %s22, 1
        // Predicated region
        $region13: #{tpu_custom_call.1} parent=11 // pred_check
          %p262 = pneg %p69
        $region14: #{tpu_custom_call.1} parent=11 // pred_check_branch
          %264 = sbr.rel (%p262) target = $region16
        $region15: #{tpu_custom_call.1} parent=11 // pred_region
          _
        $region16: #{tpu_custom_call.1} parent=11 // pred_fallthru
          _
        // Predicated region
        $region17: #{tpu_custom_call.1} parent=11 // pred_check
          %p265 = pneg %p90
        $region18: #{tpu_custom_call.1} parent=11 // pred_check_branch
          %267 = sbr.rel (%p265) target = $region20
        $region19: #{tpu_custom_call.1} parent=11 // pred_region
          %269 = vsyncadd [#allocation6], 0
          %s271 = sshll.u32 %s2, 4
          %s272 = int_to_ptr.vmem [resolvable:$true] %s271
          %274 = dma.vmem_to_smem %s272, 16, [#allocation4], [#allocation6]
        $region20: #{tpu_custom_call.1} parent=11 // pred_fallthru
          _
        // Predicated region
        $region21: #{tpu_custom_call.1} parent=11 // pred_check
          %p275 = pneg %p111
        $region22: #{tpu_custom_call.1} parent=11 // pred_check_branch
          %277 = sbr.rel (%p275) target = $region24
        $region23: #{tpu_custom_call.1} parent=11 // pred_region
          %279 = vsyncadd [#allocation8], 0
          %s281 = sshll.u32 %s3, 4
          %s282 = int_to_ptr.vmem [resolvable:$true] %s281
          %284 = dma.vmem_to_smem %s282, 16, [#allocation7], [#allocation8]
        $region24: #{tpu_custom_call.1} parent=11 // pred_fallthru
          _
        // Predicated region
        $region25: #{tpu_custom_call.1} parent=11 // pred_check
          %p285 = pneg %p132
        $region26: #{tpu_custom_call.1} parent=11 // pred_check_branch
          %287 = sbr.rel (%p285) target = $region28
        $region27: #{tpu_custom_call.1} parent=11 // pred_region
          %289 = vsyncadd [#allocation8], 0
          %s291 = sshll.u32 %s4, 4
          %s292 = int_to_ptr.vmem [resolvable:$true] %s291
          %294 = dma.vmem_to_smem %s292, 16, [#allocation9], [#allocation8]
        $region28: #{tpu_custom_call.1} parent=11 // pred_fallthru
          _
        // Predicated region
        $region29: #{tpu_custom_call.1} parent=11 // pred_check
          %p295 = pneg %p153
        $region30: #{tpu_custom_call.1} parent=11 // pred_check_branch
          %297 = sbr.rel (%p295) target = $region32
        $region31: #{tpu_custom_call.1} parent=11 // pred_region
          %299 = vsyncadd [#allocation11], 0
          %s301 = sshll.u32 %s5, 4
          %s302 = int_to_ptr.vmem [resolvable:$true] %s301
          %304 = dma.vmem_to_smem %s302, 16, [#allocation10], [#allocation11]
        $region32: #{tpu_custom_call.1} parent=11 // pred_fallthru
          _
        // Predicated region
        $region33: #{tpu_custom_call.1} parent=11 // pred_check
          %p305 = pneg %p174
        $region34: #{tpu_custom_call.1} parent=11 // pred_check_branch
          %307 = sbr.rel (%p305) target = $region36
        $region35: #{tpu_custom_call.1} parent=11 // pred_region
          _
        $region36: #{tpu_custom_call.1} parent=11 // pred_fallthru
          _
        // Predicated region
        $region37: #{tpu_custom_call.1} parent=11 // pred_check
          %p308 = pneg %p195
        $region38: #{tpu_custom_call.1} parent=11 // pred_check_branch
          %310 = sbr.rel (%p308) target = $region40
        $region39: #{tpu_custom_call.1} parent=11 // pred_region
          _
        $region40: #{tpu_custom_call.1} parent=11 // pred_fallthru
          _
      $region12: #{tpu_custom_call.1} parent=5 // pred_fallthru
        _
      %p311 = scmp.lt.s32.totalorder %s22, 2
      // Predicated region
      $region41: #{tpu_custom_call.1} parent=5 // pred_check
        %p312 = pneg %p311
      $region42: #{tpu_custom_call.1} parent=5 // pred_check_branch
        %314 = sbr.rel (%p312) target = $region44
      $region43: #{tpu_custom_call.1} parent=5 // pred_region
        // Predicated region
        $region45: #{tpu_custom_call.1} parent=43 // pred_check
          %p315 = pneg %p42
        $region46: #{tpu_custom_call.1} parent=43 // pred_check_branch
          %317 = sbr.rel (%p315) target = $region48
        $region47: #{tpu_custom_call.1} parent=43 // pred_region
          %s318 = smul.u32 8, %s22
          %p319 = scmp.lt.s32.totalorder %s318, 15
          %s320 = scalar_select %p319, %s318, 15
          %s321 = smul.addr %s320, 8
          %s322 = scalar_lea.vmem %s0, %s321
          %s323 = smul.u32 8, %s22
        $region48: #{tpu_custom_call.1} parent=43 // pred_fallthru
          _
      $region44: #{tpu_custom_call.1} parent=5 // pred_fallthru
        _
      %p324 = scmp.le.s32.totalorder 1, %s22
      %p325 = scmp.lt.s32.totalorder %s22, 3
      %p326 = pnand %p324, %p325
      %p327 = pneg %p326
      // Predicated region
      $region49: #{tpu_custom_call.1} parent=5 // pred_check
        _
      $region50: #{tpu_custom_call.1} parent=5 // pred_check_branch
        %329 = sbr.rel (%p326) target = $region52
      $region51: #{tpu_custom_call.1} parent=5 // pred_region
        %s330 = ssub.s32 %s22, 1
        // Predicated region
        $region53: #{tpu_custom_call.1} parent=51 // pred_check
          %p331 = pneg %p90
        $region54: #{tpu_custom_call.1} parent=51 // pred_check_branch
          %333 = sbr.rel (%p331) target = $region56
        $region55: #{tpu_custom_call.1} parent=51 // pred_region
          %335 = dma.done [#allocation6], 16
        $region56: #{tpu_custom_call.1} parent=51 // pred_fallthru
          _
        // Predicated region
        $region57: #{tpu_custom_call.1} parent=51 // pred_check
          %p336 = pneg %p111
        $region58: #{tpu_custom_call.1} parent=51 // pred_check_branch
          %338 = sbr.rel (%p336) target = $region60
        $region59: #{tpu_custom_call.1} parent=51 // pred_region
          %340 = dma.done [#allocation8], 16
        $region60: #{tpu_custom_call.1} parent=51 // pred_fallthru
          _
        // Predicated region
        $region61: #{tpu_custom_call.1} parent=51 // pred_check
          %p341 = pneg %p132
        $region62: #{tpu_custom_call.1} parent=51 // pred_check_branch
          %343 = sbr.rel (%p341) target = $region64
        $region63: #{tpu_custom_call.1} parent=51 // pred_region
          %345 = dma.done [#allocation8], 16
        $region64: #{tpu_custom_call.1} parent=51 // pred_fallthru
          _
        // Predicated region
        $region65: #{tpu_custom_call.1} parent=51 // pred_check
          %p346 = pneg %p153
        $region66: #{tpu_custom_call.1} parent=51 // pred_check_branch
          %348 = sbr.rel (%p346) target = $region68
        $region67: #{tpu_custom_call.1} parent=51 // pred_region
          %350 = dma.done [#allocation11], 16
        $region68: #{tpu_custom_call.1} parent=51 // pred_fallthru
          _
        %351 = sfence
        %s352 = smul.u32 8, %s27
        %p353 = scmp.lt.s32.totalorder %s352, 15
        %s354 = scalar_select %p353, %s352, 15
        %s355 = smul.addr %s354, 8
        %s356 = scalar_lea.vmem %s0, %s355
        %p357 = pneg %p48
        %p358 = pneg %p45
        %p359 = pneg %p69
        %p360 = pneg %p66
        %p361 = pneg %p90
        %p362 = pneg %p87
        %p363 = pneg %p111
        %p364 = pneg %p108
        %p365 = pneg %p132
        %p366 = pneg %p129
        %p367 = pneg %p153
        %p368 = pneg %p150
        %p369 = pneg %p174
        %p370 = pneg %p171
        %p371 = pneg %p195
        %p372 = pneg %p192
        %p373 = pneg %p221
        %p374 = pneg %p218
        %s375 = sand.u32 %s208, 1
        %s376 = scalar_lea.sflag [#allocation5], %s375
        %s377 = sand.u32 %s208, 1
        %s378 = smul.addr %s377, 512
        %s379 = scalar_lea.vmem [#allocation12], %s378
        %p380 = pneg %p247
        %p381 = pneg %p244
        %s382 = smul.u32 8, %s27
        %p383 = scmp.lt.s32.totalorder %s382, 15
        %s384 = scalar_select %p383, %s382, 15
        %s385 = smul.addr %s384, 8
        %s386 = scalar_lea.vmem %s9, %s385
        %s387 = smul.u32 8, %s27
        %p388 = scmp.lt.s32.totalorder %s387, 15
        %s389 = scalar_select %p388, %s387, 15
        %s390 = smul.addr %s389, 8
        %s391 = scalar_lea.vmem %s0, %s390
        %s392 = smul.u32 8, %s27
        %s393 = smul.u32 8, %s27
        %s394 = smul.u32 8, %s27
        %p395 = scmp.lt.s32.totalorder %s394, 15
        %s396 = scalar_select %p395, %s394, 15
        %s397 = smul.addr %s396, 8
        %s398 = scalar_lea.vmem %s9, %s397
        %s399 = smul.u32 8, %s27
        %v400 = vld [vmem:[%s391] sm:$0xff]
        %v401 = vld [vmem:[%s391 + $0x8] sm:$0xff]
        %v402 = vld [vmem:[%s391 + $0x10] sm:$0xff]
        %v403 = vld [vmem:[%s391 + $0x18] sm:$0xff]
        %v404 = vld [vmem:[%s391 + $0x20] sm:$0xff]
        %v405 = vld [vmem:[%s391 + $0x28] sm:$0xff]
        %v406 = vld [vmem:[%s391 + $0x30] sm:$0xff]
        %v407 = vld [vmem:[%s391 + $0x38] sm:$0xff]
        %v408 = vld [vmem:[%s1] sm:$0x1]
        %410 = vset.pattern.permute.xlu0 0
        %411 = vperm.xlu0 %410, %v400
        %v412 = vpop.permute.xlu0 %411
        %415 = vset.pattern.permute.xlu0 0
        %416 = vperm.xlu0 %415, %v401
        %v417 = vpop.permute.xlu0 %416
        %420 = vset.pattern.permute.xlu0 0
        %421 = vperm.xlu0 %420, %v402
        %v422 = vpop.permute.xlu0 %421
        %425 = vset.pattern.permute.xlu0 0
        %426 = vperm.xlu0 %425, %v403
        %v427 = vpop.permute.xlu0 %426
        %430 = vset.pattern.permute.xlu0 0
        %431 = vperm.xlu0 %430, %v404
        %v432 = vpop.permute.xlu0 %431
        %435 = vset.pattern.permute.xlu0 0
        %436 = vperm.xlu0 %435, %v405
        %v437 = vpop.permute.xlu0 %436
        %440 = vset.pattern.permute.xlu0 0
        %441 = vperm.xlu0 %440, %v406
        %v442 = vpop.permute.xlu0 %441
        %445 = vset.pattern.permute.xlu0 0
        %446 = vperm.xlu0 %445, %v407
        %v447 = vpop.permute.xlu0 %446
        %v449 = vperm.slane %v408, 0
        %v450 = vsub.f32 %v412, %v449
        %v451 = vsub.f32 %v417, %v449
        %v452 = vsub.f32 %v422, %v449
        %v453 = vsub.f32 %v427, %v449
        %v454 = vsub.f32 %v432, %v449
        %v455 = vsub.f32 %v437, %v449
        %v456 = vsub.f32 %v442, %v449
        %v457 = vsub.f32 %v447, %v449
        %v458 = vld [vmem:[%s1 + $0x1] sm:$0x1]
        %459 = vset.pattern.permute.xlu0 1
        %460 = vperm.xlu0 %459, %v400
        %v461 = vpop.permute.xlu0 %460
        %463 = vset.pattern.permute.xlu0 1
        %464 = vperm.xlu0 %463, %v401
        %v465 = vpop.permute.xlu0 %464
        %467 = vset.pattern.permute.xlu0 1
        %468 = vperm.xlu0 %467, %v402
        %v469 = vpop.permute.xlu0 %468
        %471 = vset.pattern.permute.xlu0 1
        %472 = vperm.xlu0 %471, %v403
        %v473 = vpop.permute.xlu0 %472
        %475 = vset.pattern.permute.xlu0 1
        %476 = vperm.xlu0 %475, %v404
        %v477 = vpop.permute.xlu0 %476
        %479 = vset.pattern.permute.xlu0 1
        %480 = vperm.xlu0 %479, %v405
        %v481 = vpop.permute.xlu0 %480
        %483 = vset.pattern.permute.xlu0 1
        %484 = vperm.xlu0 %483, %v406
        %v485 = vpop.permute.xlu0 %484
        %487 = vset.pattern.permute.xlu0 1
        %488 = vperm.xlu0 %487, %v407
        %v489 = vpop.permute.xlu0 %488
        %v491 = vperm.slane %v458, 0
        %v492 = vsub.f32 %v461, %v491
        %v493 = vsub.f32 %v465, %v491
        %v494 = vsub.f32 %v469, %v491
        %v495 = vsub.f32 %v473, %v491
        %v496 = vsub.f32 %v477, %v491
        %v497 = vsub.f32 %v481, %v491
        %v498 = vsub.f32 %v485, %v491
        %v499 = vsub.f32 %v489, %v491
        %v500 = vmul.f32 %v450, %v450
        %v501 = vmul.f32 %v451, %v451
        %v502 = vmul.f32 %v452, %v452
        %v503 = vmul.f32 %v453, %v453
        %v504 = vmul.f32 %v454, %v454
        %v505 = vmul.f32 %v455, %v455
        %v506 = vmul.f32 %v456, %v456
        %v507 = vmul.f32 %v457, %v457
        %v508 = vmul.f32 %v492, %v492
        %v509 = vmul.f32 %v493, %v493
        %v510 = vmul.f32 %v494, %v494
        %v511 = vmul.f32 %v495, %v495
        %v512 = vmul.f32 %v496, %v496
        %v513 = vmul.f32 %v497, %v497
        %v514 = vmul.f32 %v498, %v498
        %v515 = vmul.f32 %v499, %v499
        %v516 = vadd.f32 %v500, %v508
        %v517 = vadd.f32 %v501, %v509
        %v518 = vadd.f32 %v502, %v510
        %v519 = vadd.f32 %v503, %v511
        %v520 = vadd.f32 %v504, %v512
        %v521 = vadd.f32 %v505, %v513
        %v522 = vadd.f32 %v506, %v514
        %v523 = vadd.f32 %v507, %v515
        %v524 = vrsqrt.pop %v516
        %v525 = vmul.f32 %v524, %v516
        %v526 = vmul.f32 %v525, %v524
        %v527 = vmul.f32 0.5, %v526
        %v528 = vsub.f32 1.5, %v527
        %v529 = vmul.f32 %v524, %v528
        %v530 = vmul.f32 %v516, %v529
        %vm531 = vcmp.eq.f32.partialorder %v516, inf
        %v532 = vsel %vm531, %v516, %v530
        %vm533 = vcmp.eq.f32.partialorder %v516, 0.0
        %v534 = vand.u32 %v516, 2147483648
        %v535 = vsel %vm533, %v534, %v532
        %v536 = vrsqrt.pop %v517
        %v537 = vmul.f32 %v536, %v517
        %v538 = vmul.f32 %v537, %v536
        %v539 = vmul.f32 0.5, %v538
        %v540 = vsub.f32 1.5, %v539
        %v541 = vmul.f32 %v536, %v540
        %v542 = vmul.f32 %v517, %v541
        %vm543 = vcmp.eq.f32.partialorder %v517, inf
        %v544 = vsel %vm543, %v517, %v542
        %vm545 = vcmp.eq.f32.partialorder %v517, 0.0
        %v546 = vand.u32 %v517, 2147483648
        %v547 = vsel %vm545, %v546, %v544
        %v548 = vrsqrt.pop %v518
        %v549 = vmul.f32 %v548, %v518
        %v550 = vmul.f32 %v549, %v548
        %v551 = vmul.f32 0.5, %v550
        %v552 = vsub.f32 1.5, %v551
        %v553 = vmul.f32 %v548, %v552
        %v554 = vmul.f32 %v518, %v553
        %vm555 = vcmp.eq.f32.partialorder %v518, inf
        %v556 = vsel %vm555, %v518, %v554
        %vm557 = vcmp.eq.f32.partialorder %v518, 0.0
        %v558 = vand.u32 %v518, 2147483648
        %v559 = vsel %vm557, %v558, %v556
        %v560 = vrsqrt.pop %v519
        %v561 = vmul.f32 %v560, %v519
        %v562 = vmul.f32 %v561, %v560
        %v563 = vmul.f32 0.5, %v562
        %v564 = vsub.f32 1.5, %v563
        %v565 = vmul.f32 %v560, %v564
        %v566 = vmul.f32 %v519, %v565
        %vm567 = vcmp.eq.f32.partialorder %v519, inf
        %v568 = vsel %vm567, %v519, %v566
        %vm569 = vcmp.eq.f32.partialorder %v519, 0.0
        %v570 = vand.u32 %v519, 2147483648
        %v571 = vsel %vm569, %v570, %v568
        %v572 = vrsqrt.pop %v520
        %v573 = vmul.f32 %v572, %v520
        %v574 = vmul.f32 %v573, %v572
        %v575 = vmul.f32 0.5, %v574
        %v576 = vsub.f32 1.5, %v575
        %v577 = vmul.f32 %v572, %v576
        %v578 = vmul.f32 %v520, %v577
        %vm579 = vcmp.eq.f32.partialorder %v520, inf
        %v580 = vsel %vm579, %v520, %v578
        %vm581 = vcmp.eq.f32.partialorder %v520, 0.0
        %v582 = vand.u32 %v520, 2147483648
        %v583 = vsel %vm581, %v582, %v580
        %v584 = vrsqrt.pop %v521
        %v585 = vmul.f32 %v584, %v521
        %v586 = vmul.f32 %v585, %v584
        %v587 = vmul.f32 0.5, %v586
        %v588 = vsub.f32 1.5, %v587
        %v589 = vmul.f32 %v584, %v588
        %v590 = vmul.f32 %v521, %v589
        %vm591 = vcmp.eq.f32.partialorder %v521, inf
        %v592 = vsel %vm591, %v521, %v590
        %vm593 = vcmp.eq.f32.partialorder %v521, 0.0
        %v594 = vand.u32 %v521, 2147483648
        %v595 = vsel %vm593, %v594, %v592
        %v596 = vrsqrt.pop %v522
        %v597 = vmul.f32 %v596, %v522
        %v598 = vmul.f32 %v597, %v596
        %v599 = vmul.f32 0.5, %v598
        %v600 = vsub.f32 1.5, %v599
        %v601 = vmul.f32 %v596, %v600
        %v602 = vmul.f32 %v522, %v601
        %vm603 = vcmp.eq.f32.partialorder %v522, inf
        %v604 = vsel %vm603, %v522, %v602
        %vm605 = vcmp.eq.f32.partialorder %v522, 0.0
        %v606 = vand.u32 %v522, 2147483648
        %v607 = vsel %vm605, %v606, %v604
        %v608 = vrsqrt.pop %v523
        %v609 = vmul.f32 %v608, %v523
        %v610 = vmul.f32 %v609, %v608
        %v611 = vmul.f32 0.5, %v610
        %v612 = vsub.f32 1.5, %v611
        %v613 = vmul.f32 %v608, %v612
        %v614 = vmul.f32 %v523, %v613
        %vm615 = vcmp.eq.f32.partialorder %v523, inf
        %v616 = vsel %vm615, %v523, %v614
        %vm617 = vcmp.eq.f32.partialorder %v523, 0.0
        %v618 = vand.u32 %v523, 2147483648
        %v619 = vsel %vm617, %v618, %v616
        %s620 = sld [smem:[#allocation4]]
        %v621 = vstv %s620
        %v622 = vsub.f32 %v535, %v621
        %v623 = vsub.f32 %v547, %v621
        %v624 = vsub.f32 %v559, %v621
        %v625 = vsub.f32 %v571, %v621
        %v626 = vsub.f32 %v583, %v621
        %v627 = vsub.f32 %v595, %v621
        %v628 = vsub.f32 %v607, %v621
        %v629 = vsub.f32 %v619, %v621
        %s630 = sld [smem:[#allocation7]]
        %v631 = vmul.f32 %v622, %v622
        %v632 = vmul.f32 %v623, %v623
        %v633 = vmul.f32 %v624, %v624
        %v634 = vmul.f32 %v625, %v625
        %v635 = vmul.f32 %v626, %v626
        %v636 = vmul.f32 %v627, %v627
        %v637 = vmul.f32 %v628, %v628
        %v638 = vmul.f32 %v629, %v629
        %v639 = vstv %s630
        %v640 = vmul.f32 %v639, %v631
        %v641 = vmul.f32 %v639, %v632
        %v642 = vmul.f32 %v639, %v633
        %v643 = vmul.f32 %v639, %v634
        %v644 = vmul.f32 %v639, %v635
        %v645 = vmul.f32 %v639, %v636
        %v646 = vmul.f32 %v639, %v637
        %v647 = vmul.f32 %v639, %v638
        %v648 = vmul.f32 %v640, 1.442695
        %v649 = vpow.pop %v648
        %v650 = vmul.f32 %v641, 1.442695
        %v651 = vpow.pop %v650
        %v652 = vmul.f32 %v642, 1.442695
        %v653 = vpow.pop %v652
        %v654 = vmul.f32 %v643, 1.442695
        %v655 = vpow.pop %v654
        %v656 = vmul.f32 %v644, 1.442695
        %v657 = vpow.pop %v656
        %v658 = vmul.f32 %v645, 1.442695
        %v659 = vpow.pop %v658
        %v660 = vmul.f32 %v646, 1.442695
        %v661 = vpow.pop %v660
        %v662 = vmul.f32 %v647, 1.442695
        %v663 = vpow.pop %v662
        %664 = vst [vmem:[#allocation2] sm:$0xff] %v649
        %665 = vst [vmem:[#allocation2 + $0x8] sm:$0xff] %v651
        %666 = vst [vmem:[#allocation2 + $0x10] sm:$0xff] %v653
        %667 = vst [vmem:[#allocation2 + $0x18] sm:$0xff] %v655
        %668 = vst [vmem:[#allocation2 + $0x20] sm:$0xff] %v657
        %669 = vst [vmem:[#allocation2 + $0x28] sm:$0xff] %v659
        %670 = vst [vmem:[#allocation2 + $0x30] sm:$0xff] %v661
        %671 = vst [vmem:[#allocation2 + $0x38] sm:$0xff] %v663
        %672 = vadd.xlane.f32.xlu0 %v649
        %v673 = vpop.xlane.xlu0 %672
        %674 = vadd.xlane.f32.xlu0 %v651
        %v675 = vpop.xlane.xlu0 %674
        %676 = vadd.xlane.f32.xlu0 %v653
        %v677 = vpop.xlane.xlu0 %676
        %678 = vadd.xlane.f32.xlu0 %v655
        %v679 = vpop.xlane.xlu0 %678
        %680 = vadd.xlane.f32.xlu0 %v657
        %v681 = vpop.xlane.xlu0 %680
        %682 = vadd.xlane.f32.xlu0 %v659
        %v683 = vpop.xlane.xlu0 %682
        %684 = vadd.xlane.f32.xlu0 %v661
        %v685 = vpop.xlane.xlu0 %684
        %686 = vadd.xlane.f32.xlu0 %v663
        %v687 = vpop.xlane.xlu0 %686
        %vm688 = vcmask 7168
        %689 = vst.msk [vmem:[#allocation3] sm:$0xff] %vm688, %v673
        %690 = vst.msk [vmem:[#allocation3 + $0x8] sm:$0xff] %vm688, %v675
        %691 = vst.msk [vmem:[#allocation3 + $0x10] sm:$0xff] %vm688, %v677
        %692 = vst.msk [vmem:[#allocation3 + $0x18] sm:$0xff] %vm688, %v679
        %693 = vst.msk [vmem:[#allocation3 + $0x20] sm:$0xff] %vm688, %v681
        %694 = vst.msk [vmem:[#allocation3 + $0x28] sm:$0xff] %vm688, %v683
        %695 = vst.msk [vmem:[#allocation3 + $0x30] sm:$0xff] %vm688, %v685
        %696 = vst.msk [vmem:[#allocation3 + $0x38] sm:$0xff] %vm688, %v687
        %s697 = sld [smem:[#allocation4 + $0x1]]
        %v698 = vstv %s697
        %v699 = vsub.f32 %v535, %v698
        %v700 = vsub.f32 %v547, %v698
        %v701 = vsub.f32 %v559, %v698
        %v702 = vsub.f32 %v571, %v698
        %v703 = vsub.f32 %v583, %v698
        %v704 = vsub.f32 %v595, %v698
        %v705 = vsub.f32 %v607, %v698
        %v706 = vsub.f32 %v619, %v698
        %s707 = sld [smem:[#allocation7 + $0x1]]
        %v708 = vmul.f32 %v699, %v699
        %v709 = vmul.f32 %v700, %v700
        %v710 = vmul.f32 %v701, %v701
        %v711 = vmul.f32 %v702, %v702
        %v712 = vmul.f32 %v703, %v703
        %v713 = vmul.f32 %v704, %v704
        %v714 = vmul.f32 %v705, %v705
        %v715 = vmul.f32 %v706, %v706
        %v716 = vstv %s707
        %v717 = vmul.f32 %v716, %v708
        %v718 = vmul.f32 %v716, %v709
        %v719 = vmul.f32 %v716, %v710
        %v720 = vmul.f32 %v716, %v711
        %v721 = vmul.f32 %v716, %v712
        %v722 = vmul.f32 %v716, %v713
        %v723 = vmul.f32 %v716, %v714
        %v724 = vmul.f32 %v716, %v715
        %v725 = vmul.f32 %v717, 1.442695
        %v726 = vpow.pop %v725
        %v727 = vmul.f32 %v718, 1.442695
        %v728 = vpow.pop %v727
        %v729 = vmul.f32 %v719, 1.442695
        %v730 = vpow.pop %v729
        %v731 = vmul.f32 %v720, 1.442695
        %v732 = vpow.pop %v731
        %v733 = vmul.f32 %v721, 1.442695
        %v734 = vpow.pop %v733
        %v735 = vmul.f32 %v722, 1.442695
        %v736 = vpow.pop %v735
        %v737 = vmul.f32 %v723, 1.442695
        %v738 = vpow.pop %v737
        %v739 = vmul.f32 %v724, 1.442695
        %v740 = vpow.pop %v739
        %s741 = scalar_lea.vmem [#allocation2], 64
        %742 = vst [vmem:[%s741] sm:$0xff] %v726
        %743 = vst [vmem:[%s741 + $0x8] sm:$0xff] %v728
        %744 = vst [vmem:[%s741 + $0x10] sm:$0xff] %v730
        %745 = vst [vmem:[%s741 + $0x18] sm:$0xff] %v732
        %746 = vst [vmem:[%s741 + $0x20] sm:$0xff] %v734
        %747 = vst [vmem:[%s741 + $0x28] sm:$0xff] %v736
        %748 = vst [vmem:[%s741 + $0x30] sm:$0xff] %v738
        %749 = vst [vmem:[%s741 + $0x38] sm:$0xff] %v740
        %750 = vadd.xlane.f32.xlu0 %v726
        %v751 = vpop.xlane.xlu0 %750
        %752 = vadd.xlane.f32.xlu0 %v728
        %v753 = vpop.xlane.xlu0 %752
        %754 = vadd.xlane.f32.xlu0 %v730
        %v755 = vpop.xlane.xlu0 %754
        %756 = vadd.xlane.f32.xlu0 %v732
        %v757 = vpop.xlane.xlu0 %756
        %758 = vadd.xlane.f32.xlu0 %v734
        %v759 = vpop.xlane.xlu0 %758
        %760 = vadd.xlane.f32.xlu0 %v736
        %v761 = vpop.xlane.xlu0 %760
        %762 = vadd.xlane.f32.xlu0 %v738
        %v763 = vpop.xlane.xlu0 %762
        %764 = vadd.xlane.f32.xlu0 %v740
        %v765 = vpop.xlane.xlu0 %764
        %vm766 = vcmask 15368
        %767 = vst.msk [vmem:[#allocation3] sm:$0xff] %vm766, %v751
        %768 = vst.msk [vmem:[#allocation3 + $0x8] sm:$0xff] %vm766, %v753
        %769 = vst.msk [vmem:[#allocation3 + $0x10] sm:$0xff] %vm766, %v755
        %770 = vst.msk [vmem:[#allocation3 + $0x18] sm:$0xff] %vm766, %v757
        %771 = vst.msk [vmem:[#allocation3 + $0x20] sm:$0xff] %vm766, %v759
        %772 = vst.msk [vmem:[#allocation3 + $0x28] sm:$0xff] %vm766, %v761
        %773 = vst.msk [vmem:[#allocation3 + $0x30] sm:$0xff] %vm766, %v763
        %774 = vst.msk [vmem:[#allocation3 + $0x38] sm:$0xff] %vm766, %v765
        %s775 = sld [smem:[#allocation4 + $0x2]]
        %v776 = vstv %s775
        %v777 = vsub.f32 %v535, %v776
        %v778 = vsub.f32 %v547, %v776
        %v779 = vsub.f32 %v559, %v776
        %v780 = vsub.f32 %v571, %v776
        %v781 = vsub.f32 %v583, %v776
        %v782 = vsub.f32 %v595, %v776
        %v783 = vsub.f32 %v607, %v776
        %v784 = vsub.f32 %v619, %v776
        %s785 = sld [smem:[#allocation7 + $0x2]]
        %v786 = vmul.f32 %v777, %v777
        %v787 = vmul.f32 %v778, %v778
        %v788 = vmul.f32 %v779, %v779
        %v789 = vmul.f32 %v780, %v780
        %v790 = vmul.f32 %v781, %v781
        %v791 = vmul.f32 %v782, %v782
        %v792 = vmul.f32 %v783, %v783
        %v793 = vmul.f32 %v784, %v784
        %v794 = vstv %s785
        %v795 = vmul.f32 %v794, %v786
        %v796 = vmul.f32 %v794, %v787
        %v797 = vmul.f32 %v794, %v788
        %v798 = vmul.f32 %v794, %v789
        %v799 = vmul.f32 %v794, %v790
        %v800 = vmul.f32 %v794, %v791
        %v801 = vmul.f32 %v794, %v792
        %v802 = vmul.f32 %v794, %v793
        %v803 = vmul.f32 %v795, 1.442695
        %v804 = vpow.pop %v803
        %v805 = vmul.f32 %v796, 1.442695
        %v806 = vpow.pop %v805
        %v807 = vmul.f32 %v797, 1.442695
        %v808 = vpow.pop %v807
        %v809 = vmul.f32 %v798, 1.442695
        %v810 = vpow.pop %v809
        %v811 = vmul.f32 %v799, 1.442695
        %v812 = vpow.pop %v811
        %v813 = vmul.f32 %v800, 1.442695
        %v814 = vpow.pop %v813
        %v815 = vmul.f32 %v801, 1.442695
        %v816 = vpow.pop %v815
        %v817 = vmul.f32 %v802, 1.442695
        %v818 = vpow.pop %v817
        %s819 = scalar_lea.vmem [#allocation2], 128
        %820 = vst [vmem:[%s819] sm:$0xff] %v804
        %821 = vst [vmem:[%s819 + $0x8] sm:$0xff] %v806
        %822 = vst [vmem:[%s819 + $0x10] sm:$0xff] %v808
        %823 = vst [vmem:[%s819 + $0x18] sm:$0xff] %v810
        %824 = vst [vmem:[%s819 + $0x20] sm:$0xff] %v812
        %825 = vst [vmem:[%s819 + $0x28] sm:$0xff] %v814
        %826 = vst [vmem:[%s819 + $0x30] sm:$0xff] %v816
        %827 = vst [vmem:[%s819 + $0x38] sm:$0xff] %v818
        %828 = vadd.xlane.f32.xlu0 %v804
        %v829 = vpop.xlane.xlu0 %828
        %830 = vadd.xlane.f32.xlu0 %v806
        %v831 = vpop.xlane.xlu0 %830
        %832 = vadd.xlane.f32.xlu0 %v808
        %v833 = vpop.xlane.xlu0 %832
        %834 = vadd.xlane.f32.xlu0 %v810
        %v835 = vpop.xlane.xlu0 %834
        %836 = vadd.xlane.f32.xlu0 %v812
        %v837 = vpop.xlane.xlu0 %836
        %838 = vadd.xlane.f32.xlu0 %v814
        %v839 = vpop.xlane.xlu0 %838
        %840 = vadd.xlane.f32.xlu0 %v816
        %v841 = vpop.xlane.xlu0 %840
        %842 = vadd.xlane.f32.xlu0 %v818
        %v843 = vpop.xlane.xlu0 %842
        %vm844 = vcmask 23568
        %845 = vst.msk [vmem:[#allocation3] sm:$0xff] %vm844, %v829
        %846 = vst.msk [vmem:[#allocation3 + $0x8] sm:$0xff] %vm844, %v831
        %847 = vst.msk [vmem:[#allocation3 + $0x10] sm:$0xff] %vm844, %v833
        %848 = vst.msk [vmem:[#allocation3 + $0x18] sm:$0xff] %vm844, %v835
        %849 = vst.msk [vmem:[#allocation3 + $0x20] sm:$0xff] %vm844, %v837
        %850 = vst.msk [vmem:[#allocation3 + $0x28] sm:$0xff] %vm844, %v839
        %851 = vst.msk [vmem:[#allocation3 + $0x30] sm:$0xff] %vm844, %v841
        %852 = vst.msk [vmem:[#allocation3 + $0x38] sm:$0xff] %vm844, %v843
        %s853 = sld [smem:[#allocation4 + $0x3]]
        %v854 = vstv %s853
        %v855 = vsub.f32 %v535, %v854
        %v856 = vsub.f32 %v547, %v854
        %v857 = vsub.f32 %v559, %v854
        %v858 = vsub.f32 %v571, %v854
        %v859 = vsub.f32 %v583, %v854
        %v860 = vsub.f32 %v595, %v854
        %v861 = vsub.f32 %v607, %v854
        %v862 = vsub.f32 %v619, %v854
        %s863 = sld [smem:[#allocation7 + $0x3]]
        %v864 = vmul.f32 %v855, %v855
        %v865 = vmul.f32 %v856, %v856
        %v866 = vmul.f32 %v857, %v857
        %v867 = vmul.f32 %v858, %v858
        %v868 = vmul.f32 %v859, %v859
        %v869 = vmul.f32 %v860, %v860
        %v870 = vmul.f32 %v861, %v861
        %v871 = vmul.f32 %v862, %v862
        %v872 = vstv %s863
        %v873 = vmul.f32 %v872, %v864
        %v874 = vmul.f32 %v872, %v865
        %v875 = vmul.f32 %v872, %v866
        %v876 = vmul.f32 %v872, %v867
        %v877 = vmul.f32 %v872, %v868
        %v878 = vmul.f32 %v872, %v869
        %v879 = vmul.f32 %v872, %v870
        %v880 = vmul.f32 %v872, %v871
        %v881 = vmul.f32 %v873, 1.442695
        %v882 = vpow.pop %v881
        %v883 = vmul.f32 %v874, 1.442695
        %v884 = vpow.pop %v883
        %v885 = vmul.f32 %v875, 1.442695
        %v886 = vpow.pop %v885
        %v887 = vmul.f32 %v876, 1.442695
        %v888 = vpow.pop %v887
        %v889 = vmul.f32 %v877, 1.442695
        %v890 = vpow.pop %v889
        %v891 = vmul.f32 %v878, 1.442695
        %v892 = vpow.pop %v891
        %v893 = vmul.f32 %v879, 1.442695
        %v894 = vpow.pop %v893
        %v895 = vmul.f32 %v880, 1.442695
        %v896 = vpow.pop %v895
        %s897 = scalar_lea.vmem [#allocation2], 192
        %898 = vst [vmem:[%s897] sm:$0xff] %v882
        %899 = vst [vmem:[%s897 + $0x8] sm:$0xff] %v884
        %900 = vst [vmem:[%s897 + $0x10] sm:$0xff] %v886
        %901 = vst [vmem:[%s897 + $0x18] sm:$0xff] %v888
        %902 = vst [vmem:[%s897 + $0x20] sm:$0xff] %v890
        %903 = vst [vmem:[%s897 + $0x28] sm:$0xff] %v892
        %904 = vst [vmem:[%s897 + $0x30] sm:$0xff] %v894
        %905 = vst [vmem:[%s897 + $0x38] sm:$0xff] %v896
        %906 = vadd.xlane.f32.xlu0 %v882
        %v907 = vpop.xlane.xlu0 %906
        %908 = vadd.xlane.f32.xlu0 %v884
        %v909 = vpop.xlane.xlu0 %908
        %910 = vadd.xlane.f32.xlu0 %v886
        %v911 = vpop.xlane.xlu0 %910
        %912 = vadd.xlane.f32.xlu0 %v888
        %v913 = vpop.xlane.xlu0 %912
        %914 = vadd.xlane.f32.xlu0 %v890
        %v915 = vpop.xlane.xlu0 %914
        %916 = vadd.xlane.f32.xlu0 %v892
        %v917 = vpop.xlane.xlu0 %916
        %918 = vadd.xlane.f32.xlu0 %v894
        %v919 = vpop.xlane.xlu0 %918
        %920 = vadd.xlane.f32.xlu0 %v896
        %v921 = vpop.xlane.xlu0 %920
        %vm922 = vcmask 31768
        %923 = vst.msk [vmem:[#allocation3] sm:$0xff] %vm922, %v907
        %924 = vst.msk [vmem:[#allocation3 + $0x8] sm:$0xff] %vm922, %v909
        %925 = vst.msk [vmem:[#allocation3 + $0x10] sm:$0xff] %vm922, %v911
        %926 = vst.msk [vmem:[#allocation3 + $0x18] sm:$0xff] %vm922, %v913
        %927 = vst.msk [vmem:[#allocation3 + $0x20] sm:$0xff] %vm922, %v915
        %928 = vst.msk [vmem:[#allocation3 + $0x28] sm:$0xff] %vm922, %v917
        %929 = vst.msk [vmem:[#allocation3 + $0x30] sm:$0xff] %vm922, %v919
        %930 = vst.msk [vmem:[#allocation3 + $0x38] sm:$0xff] %vm922, %v921
        %s931 = sld [smem:[#allocation9]]
        %v932 = vld [vmem:[#allocation2] sm:$0xff]
        %v933 = vld [vmem:[#allocation2 + $0x8] sm:$0xff]
        %v934 = vld [vmem:[#allocation2 + $0x10] sm:$0xff]
        %v935 = vld [vmem:[#allocation2 + $0x18] sm:$0xff]
        %v936 = vld [vmem:[#allocation2 + $0x20] sm:$0xff]
        %v937 = vld [vmem:[#allocation2 + $0x28] sm:$0xff]
        %v938 = vld [vmem:[#allocation2 + $0x30] sm:$0xff]
        %v939 = vld [vmem:[#allocation2 + $0x38] sm:$0xff]
        %v940 = vstv %s931
        %v941 = vmul.f32 %v940, %v932
        %v942 = vmul.f32 %v940, %v933
        %v943 = vmul.f32 %v940, %v934
        %v944 = vmul.f32 %v940, %v935
        %v945 = vmul.f32 %v940, %v936
        %v946 = vmul.f32 %v940, %v937
        %v947 = vmul.f32 %v940, %v938
        %v948 = vmul.f32 %v940, %v939
        %s949 = sld [smem:[#allocation10]]
        %v950 = vstv %s949
        %v951 = vadd.f32 %v941, %v950
        %v952 = vadd.f32 %v942, %v950
        %v953 = vadd.f32 %v943, %v950
        %v954 = vadd.f32 %v944, %v950
        %v955 = vadd.f32 %v945, %v950
        %v956 = vadd.f32 %v946, %v950
        %v957 = vadd.f32 %v947, %v950
        %v958 = vadd.f32 %v948, %v950
        %s959 = sld [smem:[#allocation9 + $0x8]]
        %v960 = vld [vmem:[%s741] sm:$0xff]
        %v961 = vld [vmem:[%s741 + $0x8] sm:$0xff]
        %v962 = vld [vmem:[%s741 + $0x10] sm:$0xff]
        %v963 = vld [vmem:[%s741 + $0x18] sm:$0xff]
        %v964 = vld [vmem:[%s741 + $0x20] sm:$0xff]
        %v965 = vld [vmem:[%s741 + $0x28] sm:$0xff]
        %v966 = vld [vmem:[%s741 + $0x30] sm:$0xff]
        %v967 = vld [vmem:[%s741 + $0x38] sm:$0xff]
        %v968 = vstv %s959
        %v969 = vmul.f32 %v968, %v960
        %v970 = vmul.f32 %v968, %v961
        %v971 = vmul.f32 %v968, %v962
        %v972 = vmul.f32 %v968, %v963
        %v973 = vmul.f32 %v968, %v964
        %v974 = vmul.f32 %v968, %v965
        %v975 = vmul.f32 %v968, %v966
        %v976 = vmul.f32 %v968, %v967
        %v977 = vadd.f32 %v951, %v969
        %v978 = vadd.f32 %v952, %v970
        %v979 = vadd.f32 %v953, %v971
        %v980 = vadd.f32 %v954, %v972
        %v981 = vadd.f32 %v955, %v973
        %v982 = vadd.f32 %v956, %v974
        %v983 = vadd.f32 %v957, %v975
        %v984 = vadd.f32 %v958, %v976
        %s985 = sld [smem:[#allocation9 + $0x10]]
        %v986 = vld [vmem:[%s819] sm:$0xff]
        %v987 = vld [vmem:[%s819 + $0x8] sm:$0xff]
        %v988 = vld [vmem:[%s819 + $0x10] sm:$0xff]
        %v989 = vld [vmem:[%s819 + $0x18] sm:$0xff]
        %v990 = vld [vmem:[%s819 + $0x20] sm:$0xff]
        %v991 = vld [vmem:[%s819 + $0x28] sm:$0xff]
        %v992 = vld [vmem:[%s819 + $0x30] sm:$0xff]
        %v993 = vld [vmem:[%s819 + $0x38] sm:$0xff]
        %v994 = vstv %s985
        %v995 = vmul.f32 %v994, %v986
        %v996 = vmul.f32 %v994, %v987
        %v997 = vmul.f32 %v994, %v988
        %v998 = vmul.f32 %v994, %v989
        %v999 = vmul.f32 %v994, %v990
        %v1000 = vmul.f32 %v994, %v991
        %v1001 = vmul.f32 %v994, %v992
        %v1002 = vmul.f32 %v994, %v993
        %v1003 = vadd.f32 %v977, %v995
        %v1004 = vadd.f32 %v978, %v996
        %v1005 = vadd.f32 %v979, %v997
        %v1006 = vadd.f32 %v980, %v998
        %v1007 = vadd.f32 %v981, %v999
        %v1008 = vadd.f32 %v982, %v1000
        %v1009 = vadd.f32 %v983, %v1001
        %v1010 = vadd.f32 %v984, %v1002
        %s1011 = sld [smem:[#allocation9 + $0x18]]
        %v1012 = vld [vmem:[%s897] sm:$0xff]
        %v1013 = vld [vmem:[%s897 + $0x8] sm:$0xff]
        %v1014 = vld [vmem:[%s897 + $0x10] sm:$0xff]
        %v1015 = vld [vmem:[%s897 + $0x18] sm:$0xff]
        %v1016 = vld [vmem:[%s897 + $0x20] sm:$0xff]
        %v1017 = vld [vmem:[%s897 + $0x28] sm:$0xff]
        %v1018 = vld [vmem:[%s897 + $0x30] sm:$0xff]
        %v1019 = vld [vmem:[%s897 + $0x38] sm:$0xff]
        %v1020 = vstv %s1011
        %v1021 = vmul.f32 %v1020, %v1012
        %v1022 = vmul.f32 %v1020, %v1013
        %v1023 = vmul.f32 %v1020, %v1014
        %v1024 = vmul.f32 %v1020, %v1015
        %v1025 = vmul.f32 %v1020, %v1016
        %v1026 = vmul.f32 %v1020, %v1017
        %v1027 = vmul.f32 %v1020, %v1018
        %v1028 = vmul.f32 %v1020, %v1019
        %v1029 = vadd.f32 %v1003, %v1021
        %v1030 = vadd.f32 %v1004, %v1022
        %v1031 = vadd.f32 %v1005, %v1023
        %v1032 = vadd.f32 %v1006, %v1024
        %v1033 = vadd.f32 %v1007, %v1025
        %v1034 = vadd.f32 %v1008, %v1026
        %v1035 = vadd.f32 %v1009, %v1027
        %v1036 = vadd.f32 %v1010, %v1028
        %v1037 = vmax.f32 %v1029, 0.0
        %v1038 = vmax.f32 %v1030, 0.0
        %v1039 = vmax.f32 %v1031, 0.0
        %v1040 = vmax.f32 %v1032, 0.0
        %v1041 = vmax.f32 %v1033, 0.0
        %v1042 = vmax.f32 %v1034, 0.0
        %v1043 = vmax.f32 %v1035, 0.0
        %v1044 = vmax.f32 %v1036, 0.0
        %1045 = vst [vmem:[%s379] sm:$0xff] %v1037
        %1046 = vst [vmem:[%s379 + $0x8] sm:$0xff] %v1038
        %1047 = vst [vmem:[%s379 + $0x10] sm:$0xff] %v1039
        %1048 = vst [vmem:[%s379 + $0x18] sm:$0xff] %v1040
        %1049 = vst [vmem:[%s379 + $0x20] sm:$0xff] %v1041
        %1050 = vst [vmem:[%s379 + $0x28] sm:$0xff] %v1042
        %1051 = vst [vmem:[%s379 + $0x30] sm:$0xff] %v1043
        %1052 = vst [vmem:[%s379 + $0x38] sm:$0xff] %v1044
        %s1053 = sld [smem:[#allocation9 + $0x1]]
        %v1054 = vld [vmem:[#allocation2] sm:$0xff]
        %v1055 = vld [vmem:[#allocation2 + $0x8] sm:$0xff]
        %v1056 = vld [vmem:[#allocation2 + $0x10] sm:$0xff]
        %v1057 = vld [vmem:[#allocation2 + $0x18] sm:$0xff]
        %v1058 = vld [vmem:[#allocation2 + $0x20] sm:$0xff]
        %v1059 = vld [vmem:[#allocation2 + $0x28] sm:$0xff]
        %v1060 = vld [vmem:[#allocation2 + $0x30] sm:$0xff]
        %v1061 = vld [vmem:[#allocation2 + $0x38] sm:$0xff]
        %v1062 = vstv %s1053
        %v1063 = vmul.f32 %v1062, %v1054
        %v1064 = vmul.f32 %v1062, %v1055
        %v1065 = vmul.f32 %v1062, %v1056
        %v1066 = vmul.f32 %v1062, %v1057
        %v1067 = vmul.f32 %v1062, %v1058
        %v1068 = vmul.f32 %v1062, %v1059
        %v1069 = vmul.f32 %v1062, %v1060
        %v1070 = vmul.f32 %v1062, %v1061
        %s1071 = sld [smem:[#allocation10 + $0x1]]
        %v1072 = vstv %s1071
        %v1073 = vadd.f32 %v1063, %v1072
        %v1074 = vadd.f32 %v1064, %v1072
        %v1075 = vadd.f32 %v1065, %v1072
        %v1076 = vadd.f32 %v1066, %v1072
        %v1077 = vadd.f32 %v1067, %v1072
        %v1078 = vadd.f32 %v1068, %v1072
        %v1079 = vadd.f32 %v1069, %v1072
        %v1080 = vadd.f32 %v1070, %v1072
        %s1081 = sld [smem:[#allocation9 + $0x9]]
        %v1082 = vld [vmem:[%s741] sm:$0xff]
        %v1083 = vld [vmem:[%s741 + $0x8] sm:$0xff]
        %v1084 = vld [vmem:[%s741 + $0x10] sm:$0xff]
        %v1085 = vld [vmem:[%s741 + $0x18] sm:$0xff]
        %v1086 = vld [vmem:[%s741 + $0x20] sm:$0xff]
        %v1087 = vld [vmem:[%s741 + $0x28] sm:$0xff]
        %v1088 = vld [vmem:[%s741 + $0x30] sm:$0xff]
        %v1089 = vld [vmem:[%s741 + $0x38] sm:$0xff]
        %v1090 = vstv %s1081
        %v1091 = vmul.f32 %v1090, %v1082
        %v1092 = vmul.f32 %v1090, %v1083
        %v1093 = vmul.f32 %v1090, %v1084
        %v1094 = vmul.f32 %v1090, %v1085
        %v1095 = vmul.f32 %v1090, %v1086
        %v1096 = vmul.f32 %v1090, %v1087
        %v1097 = vmul.f32 %v1090, %v1088
        %v1098 = vmul.f32 %v1090, %v1089
        %v1099 = vadd.f32 %v1073, %v1091
        %v1100 = vadd.f32 %v1074, %v1092
        %v1101 = vadd.f32 %v1075, %v1093
        %v1102 = vadd.f32 %v1076, %v1094
        %v1103 = vadd.f32 %v1077, %v1095
        %v1104 = vadd.f32 %v1078, %v1096
        %v1105 = vadd.f32 %v1079, %v1097
        %v1106 = vadd.f32 %v1080, %v1098
        %s1107 = sld [smem:[#allocation9 + $0x11]]
        %v1108 = vld [vmem:[%s819] sm:$0xff]
        %v1109 = vld [vmem:[%s819 + $0x8] sm:$0xff]
        %v1110 = vld [vmem:[%s819 + $0x10] sm:$0xff]
        %v1111 = vld [vmem:[%s819 + $0x18] sm:$0xff]
        %v1112 = vld [vmem:[%s819 + $0x20] sm:$0xff]
        %v1113 = vld [vmem:[%s819 + $0x28] sm:$0xff]
        %v1114 = vld [vmem:[%s819 + $0x30] sm:$0xff]
        %v1115 = vld [vmem:[%s819 + $0x38] sm:$0xff]
        %v1116 = vstv %s1107
        %v1117 = vmul.f32 %v1116, %v1108
        %v1118 = vmul.f32 %v1116, %v1109
        %v1119 = vmul.f32 %v1116, %v1110
        %v1120 = vmul.f32 %v1116, %v1111
        %v1121 = vmul.f32 %v1116, %v1112
        %v1122 = vmul.f32 %v1116, %v1113
        %v1123 = vmul.f32 %v1116, %v1114
        %v1124 = vmul.f32 %v1116, %v1115
        %v1125 = vadd.f32 %v1099, %v1117
        %v1126 = vadd.f32 %v1100, %v1118
        %v1127 = vadd.f32 %v1101, %v1119
        %v1128 = vadd.f32 %v1102, %v1120
        %v1129 = vadd.f32 %v1103, %v1121
        %v1130 = vadd.f32 %v1104, %v1122
        %v1131 = vadd.f32 %v1105, %v1123
        %v1132 = vadd.f32 %v1106, %v1124
        %s1133 = sld [smem:[#allocation9 + $0x19]]
        %v1134 = vld [vmem:[%s897] sm:$0xff]
        %v1135 = vld [vmem:[%s897 + $0x8] sm:$0xff]
        %v1136 = vld [vmem:[%s897 + $0x10] sm:$0xff]
        %v1137 = vld [vmem:[%s897 + $0x18] sm:$0xff]
        %v1138 = vld [vmem:[%s897 + $0x20] sm:$0xff]
        %v1139 = vld [vmem:[%s897 + $0x28] sm:$0xff]
        %v1140 = vld [vmem:[%s897 + $0x30] sm:$0xff]
        %v1141 = vld [vmem:[%s897 + $0x38] sm:$0xff]
        %v1142 = vstv %s1133
        %v1143 = vmul.f32 %v1142, %v1134
        %v1144 = vmul.f32 %v1142, %v1135
        %v1145 = vmul.f32 %v1142, %v1136
        %v1146 = vmul.f32 %v1142, %v1137
        %v1147 = vmul.f32 %v1142, %v1138
        %v1148 = vmul.f32 %v1142, %v1139
        %v1149 = vmul.f32 %v1142, %v1140
        %v1150 = vmul.f32 %v1142, %v1141
        %v1151 = vadd.f32 %v1125, %v1143
        %v1152 = vadd.f32 %v1126, %v1144
        %v1153 = vadd.f32 %v1127, %v1145
        %v1154 = vadd.f32 %v1128, %v1146
        %v1155 = vadd.f32 %v1129, %v1147
        %v1156 = vadd.f32 %v1130, %v1148
        %v1157 = vadd.f32 %v1131, %v1149
        %v1158 = vadd.f32 %v1132, %v1150
        %v1159 = vmax.f32 %v1151, 0.0
        %v1160 = vmax.f32 %v1152, 0.0
        %v1161 = vmax.f32 %v1153, 0.0
        %v1162 = vmax.f32 %v1154, 0.0
        %v1163 = vmax.f32 %v1155, 0.0
        %v1164 = vmax.f32 %v1156, 0.0
        %v1165 = vmax.f32 %v1157, 0.0
        %v1166 = vmax.f32 %v1158, 0.0
        %s1167 = scalar_lea.vmem %s379, 64 [#allocation12]
        %1168 = vst [vmem:[%s1167] sm:$0xff] %v1159
        %1169 = vst [vmem:[%s1167 + $0x8] sm:$0xff] %v1160
        %1170 = vst [vmem:[%s1167 + $0x10] sm:$0xff] %v1161
        %1171 = vst [vmem:[%s1167 + $0x18] sm:$0xff] %v1162
        %1172 = vst [vmem:[%s1167 + $0x20] sm:$0xff] %v1163
        %1173 = vst [vmem:[%s1167 + $0x28] sm:$0xff] %v1164
        %1174 = vst [vmem:[%s1167 + $0x30] sm:$0xff] %v1165
        %1175 = vst [vmem:[%s1167 + $0x38] sm:$0xff] %v1166
        %s1176 = sld [smem:[#allocation9 + $0x2]]
        %v1177 = vld [vmem:[#allocation2] sm:$0xff]
        %v1178 = vld [vmem:[#allocation2 + $0x8] sm:$0xff]
        %v1179 = vld [vmem:[#allocation2 + $0x10] sm:$0xff]
        %v1180 = vld [vmem:[#allocation2 + $0x18] sm:$0xff]
        %v1181 = vld [vmem:[#allocation2 + $0x20] sm:$0xff]
        %v1182 = vld [vmem:[#allocation2 + $0x28] sm:$0xff]
        %v1183 = vld [vmem:[#allocation2 + $0x30] sm:$0xff]
        %v1184 = vld [vmem:[#allocation2 + $0x38] sm:$0xff]
        %v1185 = vstv %s1176
        %v1186 = vmul.f32 %v1185, %v1177
        %v1187 = vmul.f32 %v1185, %v1178
        %v1188 = vmul.f32 %v1185, %v1179
        %v1189 = vmul.f32 %v1185, %v1180
        %v1190 = vmul.f32 %v1185, %v1181
        %v1191 = vmul.f32 %v1185, %v1182
        %v1192 = vmul.f32 %v1185, %v1183
        %v1193 = vmul.f32 %v1185, %v1184
        %s1194 = sld [smem:[#allocation10 + $0x2]]
        %v1195 = vstv %s1194
        %v1196 = vadd.f32 %v1186, %v1195
        %v1197 = vadd.f32 %v1187, %v1195
        %v1198 = vadd.f32 %v1188, %v1195
        %v1199 = vadd.f32 %v1189, %v1195
        %v1200 = vadd.f32 %v1190, %v1195
        %v1201 = vadd.f32 %v1191, %v1195
        %v1202 = vadd.f32 %v1192, %v1195
        %v1203 = vadd.f32 %v1193, %v1195
        %s1204 = sld [smem:[#allocation9 + $0xa]]
        %v1205 = vld [vmem:[%s741] sm:$0xff]
        %v1206 = vld [vmem:[%s741 + $0x8] sm:$0xff]
        %v1207 = vld [vmem:[%s741 + $0x10] sm:$0xff]
        %v1208 = vld [vmem:[%s741 + $0x18] sm:$0xff]
        %v1209 = vld [vmem:[%s741 + $0x20] sm:$0xff]
        %v1210 = vld [vmem:[%s741 + $0x28] sm:$0xff]
        %v1211 = vld [vmem:[%s741 + $0x30] sm:$0xff]
        %v1212 = vld [vmem:[%s741 + $0x38] sm:$0xff]
        %v1213 = vstv %s1204
        %v1214 = vmul.f32 %v1213, %v1205
        %v1215 = vmul.f32 %v1213, %v1206
        %v1216 = vmul.f32 %v1213, %v1207
        %v1217 = vmul.f32 %v1213, %v1208
        %v1218 = vmul.f32 %v1213, %v1209
        %v1219 = vmul.f32 %v1213, %v1210
        %v1220 = vmul.f32 %v1213, %v1211
        %v1221 = vmul.f32 %v1213, %v1212
        %v1222 = vadd.f32 %v1196, %v1214
        %v1223 = vadd.f32 %v1197, %v1215
        %v1224 = vadd.f32 %v1198, %v1216
        %v1225 = vadd.f32 %v1199, %v1217
        %v1226 = vadd.f32 %v1200, %v1218
        %v1227 = vadd.f32 %v1201, %v1219
        %v1228 = vadd.f32 %v1202, %v1220
        %v1229 = vadd.f32 %v1203, %v1221
        %s1230 = sld [smem:[#allocation9 + $0x12]]
        %v1231 = vld [vmem:[%s819] sm:$0xff]
        %v1232 = vld [vmem:[%s819 + $0x8] sm:$0xff]
        %v1233 = vld [vmem:[%s819 + $0x10] sm:$0xff]
        %v1234 = vld [vmem:[%s819 + $0x18] sm:$0xff]
        %v1235 = vld [vmem:[%s819 + $0x20] sm:$0xff]
        %v1236 = vld [vmem:[%s819 + $0x28] sm:$0xff]
        %v1237 = vld [vmem:[%s819 + $0x30] sm:$0xff]
        %v1238 = vld [vmem:[%s819 + $0x38] sm:$0xff]
        %v1239 = vstv %s1230
        %v1240 = vmul.f32 %v1239, %v1231
        %v1241 = vmul.f32 %v1239, %v1232
        %v1242 = vmul.f32 %v1239, %v1233
        %v1243 = vmul.f32 %v1239, %v1234
        %v1244 = vmul.f32 %v1239, %v1235
        %v1245 = vmul.f32 %v1239, %v1236
        %v1246 = vmul.f32 %v1239, %v1237
        %v1247 = vmul.f32 %v1239, %v1238
        %v1248 = vadd.f32 %v1222, %v1240
        %v1249 = vadd.f32 %v1223, %v1241
        %v1250 = vadd.f32 %v1224, %v1242
        %v1251 = vadd.f32 %v1225, %v1243
        %v1252 = vadd.f32 %v1226, %v1244
        %v1253 = vadd.f32 %v1227, %v1245
        %v1254 = vadd.f32 %v1228, %v1246
        %v1255 = vadd.f32 %v1229, %v1247
        %s1256 = sld [smem:[#allocation9 + $0x1a]]
        %v1257 = vld [vmem:[%s897] sm:$0xff]
        %v1258 = vld [vmem:[%s897 + $0x8] sm:$0xff]
        %v1259 = vld [vmem:[%s897 + $0x10] sm:$0xff]
        %v1260 = vld [vmem:[%s897 + $0x18] sm:$0xff]
        %v1261 = vld [vmem:[%s897 + $0x20] sm:$0xff]
        %v1262 = vld [vmem:[%s897 + $0x28] sm:$0xff]
        %v1263 = vld [vmem:[%s897 + $0x30] sm:$0xff]
        %v1264 = vld [vmem:[%s897 + $0x38] sm:$0xff]
        %v1265 = vstv %s1256
        %v1266 = vmul.f32 %v1265, %v1257
        %v1267 = vmul.f32 %v1265, %v1258
        %v1268 = vmul.f32 %v1265, %v1259
        %v1269 = vmul.f32 %v1265, %v1260
        %v1270 = vmul.f32 %v1265, %v1261
        %v1271 = vmul.f32 %v1265, %v1262
        %v1272 = vmul.f32 %v1265, %v1263
        %v1273 = vmul.f32 %v1265, %v1264
        %v1274 = vadd.f32 %v1248, %v1266
        %v1275 = vadd.f32 %v1249, %v1267
        %v1276 = vadd.f32 %v1250, %v1268
        %v1277 = vadd.f32 %v1251, %v1269
        %v1278 = vadd.f32 %v1252, %v1270
        %v1279 = vadd.f32 %v1253, %v1271
        %v1280 = vadd.f32 %v1254, %v1272
        %v1281 = vadd.f32 %v1255, %v1273
        %v1282 = vmax.f32 %v1274, 0.0
        %v1283 = vmax.f32 %v1275, 0.0
        %v1284 = vmax.f32 %v1276, 0.0
        %v1285 = vmax.f32 %v1277, 0.0
        %v1286 = vmax.f32 %v1278, 0.0
        %v1287 = vmax.f32 %v1279, 0.0
        %v1288 = vmax.f32 %v1280, 0.0
        %v1289 = vmax.f32 %v1281, 0.0
        %s1290 = scalar_lea.vmem %s379, 128 [#allocation12]
        %1291 = vst [vmem:[%s1290] sm:$0xff] %v1282
        %1292 = vst [vmem:[%s1290 + $0x8] sm:$0xff] %v1283
        %1293 = vst [vmem:[%s1290 + $0x10] sm:$0xff] %v1284
        %1294 = vst [vmem:[%s1290 + $0x18] sm:$0xff] %v1285
        %1295 = vst [vmem:[%s1290 + $0x20] sm:$0xff] %v1286
        %1296 = vst [vmem:[%s1290 + $0x28] sm:$0xff] %v1287
        %1297 = vst [vmem:[%s1290 + $0x30] sm:$0xff] %v1288
        %1298 = vst [vmem:[%s1290 + $0x38] sm:$0xff] %v1289
        %s1299 = sld [smem:[#allocation9 + $0x3]]
        %v1300 = vld [vmem:[#allocation2] sm:$0xff]
        %v1301 = vld [vmem:[#allocation2 + $0x8] sm:$0xff]
        %v1302 = vld [vmem:[#allocation2 + $0x10] sm:$0xff]
        %v1303 = vld [vmem:[#allocation2 + $0x18] sm:$0xff]
        %v1304 = vld [vmem:[#allocation2 + $0x20] sm:$0xff]
        %v1305 = vld [vmem:[#allocation2 + $0x28] sm:$0xff]
        %v1306 = vld [vmem:[#allocation2 + $0x30] sm:$0xff]
        %v1307 = vld [vmem:[#allocation2 + $0x38] sm:$0xff]
        %v1308 = vstv %s1299
        %v1309 = vmul.f32 %v1308, %v1300
        %v1310 = vmul.f32 %v1308, %v1301
        %v1311 = vmul.f32 %v1308, %v1302
        %v1312 = vmul.f32 %v1308, %v1303
        %v1313 = vmul.f32 %v1308, %v1304
        %v1314 = vmul.f32 %v1308, %v1305
        %v1315 = vmul.f32 %v1308, %v1306
        %v1316 = vmul.f32 %v1308, %v1307
        %s1317 = sld [smem:[#allocation10 + $0x3]]
        %v1318 = vstv %s1317
        %v1319 = vadd.f32 %v1309, %v1318
        %v1320 = vadd.f32 %v1310, %v1318
        %v1321 = vadd.f32 %v1311, %v1318
        %v1322 = vadd.f32 %v1312, %v1318
        %v1323 = vadd.f32 %v1313, %v1318
        %v1324 = vadd.f32 %v1314, %v1318
        %v1325 = vadd.f32 %v1315, %v1318
        %v1326 = vadd.f32 %v1316, %v1318
        %s1327 = sld [smem:[#allocation9 + $0xb]]
        %v1328 = vld [vmem:[%s741] sm:$0xff]
        %v1329 = vld [vmem:[%s741 + $0x8] sm:$0xff]
        %v1330 = vld [vmem:[%s741 + $0x10] sm:$0xff]
        %v1331 = vld [vmem:[%s741 + $0x18] sm:$0xff]
        %v1332 = vld [vmem:[%s741 + $0x20] sm:$0xff]
        %v1333 = vld [vmem:[%s741 + $0x28] sm:$0xff]
        %v1334 = vld [vmem:[%s741 + $0x30] sm:$0xff]
        %v1335 = vld [vmem:[%s741 + $0x38] sm:$0xff]
        %v1336 = vstv %s1327
        %v1337 = vmul.f32 %v1336, %v1328
        %v1338 = vmul.f32 %v1336, %v1329
        %v1339 = vmul.f32 %v1336, %v1330
        %v1340 = vmul.f32 %v1336, %v1331
        %v1341 = vmul.f32 %v1336, %v1332
        %v1342 = vmul.f32 %v1336, %v1333
        %v1343 = vmul.f32 %v1336, %v1334
        %v1344 = vmul.f32 %v1336, %v1335
        %v1345 = vadd.f32 %v1319, %v1337
        %v1346 = vadd.f32 %v1320, %v1338
        %v1347 = vadd.f32 %v1321, %v1339
        %v1348 = vadd.f32 %v1322, %v1340
        %v1349 = vadd.f32 %v1323, %v1341
        %v1350 = vadd.f32 %v1324, %v1342
        %v1351 = vadd.f32 %v1325, %v1343
        %v1352 = vadd.f32 %v1326, %v1344
        %s1353 = sld [smem:[#allocation9 + $0x13]]
        %v1354 = vld [vmem:[%s819] sm:$0xff]
        %v1355 = vld [vmem:[%s819 + $0x8] sm:$0xff]
        %v1356 = vld [vmem:[%s819 + $0x10] sm:$0xff]
        %v1357 = vld [vmem:[%s819 + $0x18] sm:$0xff]
        %v1358 = vld [vmem:[%s819 + $0x20] sm:$0xff]
        %v1359 = vld [vmem:[%s819 + $0x28] sm:$0xff]
        %v1360 = vld [vmem:[%s819 + $0x30] sm:$0xff]
        %v1361 = vld [vmem:[%s819 + $0x38] sm:$0xff]
        %v1362 = vstv %s1353
        %v1363 = vmul.f32 %v1362, %v1354
        %v1364 = vmul.f32 %v1362, %v1355
        %v1365 = vmul.f32 %v1362, %v1356
        %v1366 = vmul.f32 %v1362, %v1357
        %v1367 = vmul.f32 %v1362, %v1358
        %v1368 = vmul.f32 %v1362, %v1359
        %v1369 = vmul.f32 %v1362, %v1360
        %v1370 = vmul.f32 %v1362, %v1361
        %v1371 = vadd.f32 %v1345, %v1363
        %v1372 = vadd.f32 %v1346, %v1364
        %v1373 = vadd.f32 %v1347, %v1365
        %v1374 = vadd.f32 %v1348, %v1366
        %v1375 = vadd.f32 %v1349, %v1367
        %v1376 = vadd.f32 %v1350, %v1368
        %v1377 = vadd.f32 %v1351, %v1369
        %v1378 = vadd.f32 %v1352, %v1370
        %s1379 = sld [smem:[#allocation9 + $0x1b]]
        %v1380 = vld [vmem:[%s897] sm:$0xff]
        %v1381 = vld [vmem:[%s897 + $0x8] sm:$0xff]
        %v1382 = vld [vmem:[%s897 + $0x10] sm:$0xff]
        %v1383 = vld [vmem:[%s897 + $0x18] sm:$0xff]
        %v1384 = vld [vmem:[%s897 + $0x20] sm:$0xff]
        %v1385 = vld [vmem:[%s897 + $0x28] sm:$0xff]
        %v1386 = vld [vmem:[%s897 + $0x30] sm:$0xff]
        %v1387 = vld [vmem:[%s897 + $0x38] sm:$0xff]
        %v1388 = vstv %s1379
        %v1389 = vmul.f32 %v1388, %v1380
        %v1390 = vmul.f32 %v1388, %v1381
        %v1391 = vmul.f32 %v1388, %v1382
        %v1392 = vmul.f32 %v1388, %v1383
        %v1393 = vmul.f32 %v1388, %v1384
        %v1394 = vmul.f32 %v1388, %v1385
        %v1395 = vmul.f32 %v1388, %v1386
        %v1396 = vmul.f32 %v1388, %v1387
        %v1397 = vadd.f32 %v1371, %v1389
        %v1398 = vadd.f32 %v1372, %v1390
        %v1399 = vadd.f32 %v1373, %v1391
        %v1400 = vadd.f32 %v1374, %v1392
        %v1401 = vadd.f32 %v1375, %v1393
        %v1402 = vadd.f32 %v1376, %v1394
        %v1403 = vadd.f32 %v1377, %v1395
        %v1404 = vadd.f32 %v1378, %v1396
        %v1405 = vmax.f32 %v1397, 0.0
        %v1406 = vmax.f32 %v1398, 0.0
        %v1407 = vmax.f32 %v1399, 0.0
        %v1408 = vmax.f32 %v1400, 0.0
        %v1409 = vmax.f32 %v1401, 0.0
        %v1410 = vmax.f32 %v1402, 0.0
        %v1411 = vmax.f32 %v1403, 0.0
        %v1412 = vmax.f32 %v1404, 0.0
        %s1413 = scalar_lea.vmem %s379, 192 [#allocation12]
        %1414 = vst [vmem:[%s1413] sm:$0xff] %v1405
        %1415 = vst [vmem:[%s1413 + $0x8] sm:$0xff] %v1406
        %1416 = vst [vmem:[%s1413 + $0x10] sm:$0xff] %v1407
        %1417 = vst [vmem:[%s1413 + $0x18] sm:$0xff] %v1408
        %1418 = vst [vmem:[%s1413 + $0x20] sm:$0xff] %v1409
        %1419 = vst [vmem:[%s1413 + $0x28] sm:$0xff] %v1410
        %1420 = vst [vmem:[%s1413 + $0x30] sm:$0xff] %v1411
        %1421 = vst [vmem:[%s1413 + $0x38] sm:$0xff] %v1412
        %s1422 = sld [smem:[#allocation9 + $0x4]]
        %v1423 = vld [vmem:[#allocation2] sm:$0xff]
        %v1424 = vld [vmem:[#allocation2 + $0x8] sm:$0xff]
        %v1425 = vld [vmem:[#allocation2 + $0x10] sm:$0xff]
        %v1426 = vld [vmem:[#allocation2 + $0x18] sm:$0xff]
        %v1427 = vld [vmem:[#allocation2 + $0x20] sm:$0xff]
        %v1428 = vld [vmem:[#allocation2 + $0x28] sm:$0xff]
        %v1429 = vld [vmem:[#allocation2 + $0x30] sm:$0xff]
        %v1430 = vld [vmem:[#allocation2 + $0x38] sm:$0xff]
        %v1431 = vstv %s1422
        %v1432 = vmul.f32 %v1431, %v1423
        %v1433 = vmul.f32 %v1431, %v1424
        %v1434 = vmul.f32 %v1431, %v1425
        %v1435 = vmul.f32 %v1431, %v1426
        %v1436 = vmul.f32 %v1431, %v1427
        %v1437 = vmul.f32 %v1431, %v1428
        %v1438 = vmul.f32 %v1431, %v1429
        %v1439 = vmul.f32 %v1431, %v1430
        %s1440 = sld [smem:[#allocation10 + $0x4]]
        %v1441 = vstv %s1440
        %v1442 = vadd.f32 %v1432, %v1441
        %v1443 = vadd.f32 %v1433, %v1441
        %v1444 = vadd.f32 %v1434, %v1441
        %v1445 = vadd.f32 %v1435, %v1441
        %v1446 = vadd.f32 %v1436, %v1441
        %v1447 = vadd.f32 %v1437, %v1441
        %v1448 = vadd.f32 %v1438, %v1441
        %v1449 = vadd.f32 %v1439, %v1441
        %s1450 = sld [smem:[#allocation9 + $0xc]]
        %v1451 = vld [vmem:[%s741] sm:$0xff]
        %v1452 = vld [vmem:[%s741 + $0x8] sm:$0xff]
        %v1453 = vld [vmem:[%s741 + $0x10] sm:$0xff]
        %v1454 = vld [vmem:[%s741 + $0x18] sm:$0xff]
        %v1455 = vld [vmem:[%s741 + $0x20] sm:$0xff]
        %v1456 = vld [vmem:[%s741 + $0x28] sm:$0xff]
        %v1457 = vld [vmem:[%s741 + $0x30] sm:$0xff]
        %v1458 = vld [vmem:[%s741 + $0x38] sm:$0xff]
        %v1459 = vstv %s1450
        %v1460 = vmul.f32 %v1459, %v1451
        %v1461 = vmul.f32 %v1459, %v1452
        %v1462 = vmul.f32 %v1459, %v1453
        %v1463 = vmul.f32 %v1459, %v1454
        %v1464 = vmul.f32 %v1459, %v1455
        %v1465 = vmul.f32 %v1459, %v1456
        %v1466 = vmul.f32 %v1459, %v1457
        %v1467 = vmul.f32 %v1459, %v1458
        %v1468 = vadd.f32 %v1442, %v1460
        %v1469 = vadd.f32 %v1443, %v1461
        %v1470 = vadd.f32 %v1444, %v1462
        %v1471 = vadd.f32 %v1445, %v1463
        %v1472 = vadd.f32 %v1446, %v1464
        %v1473 = vadd.f32 %v1447, %v1465
        %v1474 = vadd.f32 %v1448, %v1466
        %v1475 = vadd.f32 %v1449, %v1467
        %s1476 = sld [smem:[#allocation9 + $0x14]]
        %v1477 = vld [vmem:[%s819] sm:$0xff]
        %v1478 = vld [vmem:[%s819 + $0x8] sm:$0xff]
        %v1479 = vld [vmem:[%s819 + $0x10] sm:$0xff]
        %v1480 = vld [vmem:[%s819 + $0x18] sm:$0xff]
        %v1481 = vld [vmem:[%s819 + $0x20] sm:$0xff]
        %v1482 = vld [vmem:[%s819 + $0x28] sm:$0xff]
        %v1483 = vld [vmem:[%s819 + $0x30] sm:$0xff]
        %v1484 = vld [vmem:[%s819 + $0x38] sm:$0xff]
        %v1485 = vstv %s1476
        %v1486 = vmul.f32 %v1485, %v1477
        %v1487 = vmul.f32 %v1485, %v1478
        %v1488 = vmul.f32 %v1485, %v1479
        %v1489 = vmul.f32 %v1485, %v1480
        %v1490 = vmul.f32 %v1485, %v1481
        %v1491 = vmul.f32 %v1485, %v1482
        %v1492 = vmul.f32 %v1485, %v1483
        %v1493 = vmul.f32 %v1485, %v1484
        %v1494 = vadd.f32 %v1468, %v1486
        %v1495 = vadd.f32 %v1469, %v1487
        %v1496 = vadd.f32 %v1470, %v1488
        %v1497 = vadd.f32 %v1471, %v1489
        %v1498 = vadd.f32 %v1472, %v1490
        %v1499 = vadd.f32 %v1473, %v1491
        %v1500 = vadd.f32 %v1474, %v1492
        %v1501 = vadd.f32 %v1475, %v1493
        %s1502 = sld [smem:[#allocation9 + $0x1c]]
        %v1503 = vld [vmem:[%s897] sm:$0xff]
        %v1504 = vld [vmem:[%s897 + $0x8] sm:$0xff]
        %v1505 = vld [vmem:[%s897 + $0x10] sm:$0xff]
        %v1506 = vld [vmem:[%s897 + $0x18] sm:$0xff]
        %v1507 = vld [vmem:[%s897 + $0x20] sm:$0xff]
        %v1508 = vld [vmem:[%s897 + $0x28] sm:$0xff]
        %v1509 = vld [vmem:[%s897 + $0x30] sm:$0xff]
        %v1510 = vld [vmem:[%s897 + $0x38] sm:$0xff]
        %v1511 = vstv %s1502
        %v1512 = vmul.f32 %v1511, %v1503
        %v1513 = vmul.f32 %v1511, %v1504
        %v1514 = vmul.f32 %v1511, %v1505
        %v1515 = vmul.f32 %v1511, %v1506
        %v1516 = vmul.f32 %v1511, %v1507
        %v1517 = vmul.f32 %v1511, %v1508
        %v1518 = vmul.f32 %v1511, %v1509
        %v1519 = vmul.f32 %v1511, %v1510
        %v1520 = vadd.f32 %v1494, %v1512
        %v1521 = vadd.f32 %v1495, %v1513
        %v1522 = vadd.f32 %v1496, %v1514
        %v1523 = vadd.f32 %v1497, %v1515
        %v1524 = vadd.f32 %v1498, %v1516
        %v1525 = vadd.f32 %v1499, %v1517
        %v1526 = vadd.f32 %v1500, %v1518
        %v1527 = vadd.f32 %v1501, %v1519
        %v1528 = vmax.f32 %v1520, 0.0
        %v1529 = vmax.f32 %v1521, 0.0
        %v1530 = vmax.f32 %v1522, 0.0
        %v1531 = vmax.f32 %v1523, 0.0
        %v1532 = vmax.f32 %v1524, 0.0
        %v1533 = vmax.f32 %v1525, 0.0
        %v1534 = vmax.f32 %v1526, 0.0
        %v1535 = vmax.f32 %v1527, 0.0
        %s1536 = scalar_lea.vmem %s379, 256 [#allocation12]
        %1537 = vst [vmem:[%s1536] sm:$0xff] %v1528
        %1538 = vst [vmem:[%s1536 + $0x8] sm:$0xff] %v1529
        %1539 = vst [vmem:[%s1536 + $0x10] sm:$0xff] %v1530
        %1540 = vst [vmem:[%s1536 + $0x18] sm:$0xff] %v1531
        %1541 = vst [vmem:[%s1536 + $0x20] sm:$0xff] %v1532
        %1542 = vst [vmem:[%s1536 + $0x28] sm:$0xff] %v1533
        %1543 = vst [vmem:[%s1536 + $0x30] sm:$0xff] %v1534
        %1544 = vst [vmem:[%s1536 + $0x38] sm:$0xff] %v1535
        %s1545 = sld [smem:[#allocation9 + $0x5]]
        %v1546 = vld [vmem:[#allocation2] sm:$0xff]
        %v1547 = vld [vmem:[#allocation2 + $0x8] sm:$0xff]
        %v1548 = vld [vmem:[#allocation2 + $0x10] sm:$0xff]
        %v1549 = vld [vmem:[#allocation2 + $0x18] sm:$0xff]
        %v1550 = vld [vmem:[#allocation2 + $0x20] sm:$0xff]
        %v1551 = vld [vmem:[#allocation2 + $0x28] sm:$0xff]
        %v1552 = vld [vmem:[#allocation2 + $0x30] sm:$0xff]
        %v1553 = vld [vmem:[#allocation2 + $0x38] sm:$0xff]
        %v1554 = vstv %s1545
        %v1555 = vmul.f32 %v1554, %v1546
        %v1556 = vmul.f32 %v1554, %v1547
        %v1557 = vmul.f32 %v1554, %v1548
        %v1558 = vmul.f32 %v1554, %v1549
        %v1559 = vmul.f32 %v1554, %v1550
        %v1560 = vmul.f32 %v1554, %v1551
        %v1561 = vmul.f32 %v1554, %v1552
        %v1562 = vmul.f32 %v1554, %v1553
        %s1563 = sld [smem:[#allocation10 + $0x5]]
        %v1564 = vstv %s1563
        %v1565 = vadd.f32 %v1555, %v1564
        %v1566 = vadd.f32 %v1556, %v1564
        %v1567 = vadd.f32 %v1557, %v1564
        %v1568 = vadd.f32 %v1558, %v1564
        %v1569 = vadd.f32 %v1559, %v1564
        %v1570 = vadd.f32 %v1560, %v1564
        %v1571 = vadd.f32 %v1561, %v1564
        %v1572 = vadd.f32 %v1562, %v1564
        %s1573 = sld [smem:[#allocation9 + $0xd]]
        %v1574 = vld [vmem:[%s741] sm:$0xff]
        %v1575 = vld [vmem:[%s741 + $0x8] sm:$0xff]
        %v1576 = vld [vmem:[%s741 + $0x10] sm:$0xff]
        %v1577 = vld [vmem:[%s741 + $0x18] sm:$0xff]
        %v1578 = vld [vmem:[%s741 + $0x20] sm:$0xff]
        %v1579 = vld [vmem:[%s741 + $0x28] sm:$0xff]
        %v1580 = vld [vmem:[%s741 + $0x30] sm:$0xff]
        %v1581 = vld [vmem:[%s741 + $0x38] sm:$0xff]
        %v1582 = vstv %s1573
        %v1583 = vmul.f32 %v1582, %v1574
        %v1584 = vmul.f32 %v1582, %v1575
        %v1585 = vmul.f32 %v1582, %v1576
        %v1586 = vmul.f32 %v1582, %v1577
        %v1587 = vmul.f32 %v1582, %v1578
        %v1588 = vmul.f32 %v1582, %v1579
        %v1589 = vmul.f32 %v1582, %v1580
        %v1590 = vmul.f32 %v1582, %v1581
        %v1591 = vadd.f32 %v1565, %v1583
        %v1592 = vadd.f32 %v1566, %v1584
        %v1593 = vadd.f32 %v1567, %v1585
        %v1594 = vadd.f32 %v1568, %v1586
        %v1595 = vadd.f32 %v1569, %v1587
        %v1596 = vadd.f32 %v1570, %v1588
        %v1597 = vadd.f32 %v1571, %v1589
        %v1598 = vadd.f32 %v1572, %v1590
        %s1599 = sld [smem:[#allocation9 + $0x15]]
        %v1600 = vld [vmem:[%s819] sm:$0xff]
        %v1601 = vld [vmem:[%s819 + $0x8] sm:$0xff]
        %v1602 = vld [vmem:[%s819 + $0x10] sm:$0xff]
        %v1603 = vld [vmem:[%s819 + $0x18] sm:$0xff]
        %v1604 = vld [vmem:[%s819 + $0x20] sm:$0xff]
        %v1605 = vld [vmem:[%s819 + $0x28] sm:$0xff]
        %v1606 = vld [vmem:[%s819 + $0x30] sm:$0xff]
        %v1607 = vld [vmem:[%s819 + $0x38] sm:$0xff]
        %v1608 = vstv %s1599
        %v1609 = vmul.f32 %v1608, %v1600
        %v1610 = vmul.f32 %v1608, %v1601
        %v1611 = vmul.f32 %v1608, %v1602
        %v1612 = vmul.f32 %v1608, %v1603
        %v1613 = vmul.f32 %v1608, %v1604
        %v1614 = vmul.f32 %v1608, %v1605
        %v1615 = vmul.f32 %v1608, %v1606
        %v1616 = vmul.f32 %v1608, %v1607
        %v1617 = vadd.f32 %v1591, %v1609
        %v1618 = vadd.f32 %v1592, %v1610
        %v1619 = vadd.f32 %v1593, %v1611
        %v1620 = vadd.f32 %v1594, %v1612
        %v1621 = vadd.f32 %v1595, %v1613
        %v1622 = vadd.f32 %v1596, %v1614
        %v1623 = vadd.f32 %v1597, %v1615
        %v1624 = vadd.f32 %v1598, %v1616
        %s1625 = sld [smem:[#allocation9 + $0x1d]]
        %v1626 = vld [vmem:[%s897] sm:$0xff]
        %v1627 = vld [vmem:[%s897 + $0x8] sm:$0xff]
        %v1628 = vld [vmem:[%s897 + $0x10] sm:$0xff]
        %v1629 = vld [vmem:[%s897 + $0x18] sm:$0xff]
        %v1630 = vld [vmem:[%s897 + $0x20] sm:$0xff]
        %v1631 = vld [vmem:[%s897 + $0x28] sm:$0xff]
        %v1632 = vld [vmem:[%s897 + $0x30] sm:$0xff]
        %v1633 = vld [vmem:[%s897 + $0x38] sm:$0xff]
        %v1634 = vstv %s1625
        %v1635 = vmul.f32 %v1634, %v1626
        %v1636 = vmul.f32 %v1634, %v1627
        %v1637 = vmul.f32 %v1634, %v1628
        %v1638 = vmul.f32 %v1634, %v1629
        %v1639 = vmul.f32 %v1634, %v1630
        %v1640 = vmul.f32 %v1634, %v1631
        %v1641 = vmul.f32 %v1634, %v1632
        %v1642 = vmul.f32 %v1634, %v1633
        %v1643 = vadd.f32 %v1617, %v1635
        %v1644 = vadd.f32 %v1618, %v1636
        %v1645 = vadd.f32 %v1619, %v1637
        %v1646 = vadd.f32 %v1620, %v1638
        %v1647 = vadd.f32 %v1621, %v1639
        %v1648 = vadd.f32 %v1622, %v1640
        %v1649 = vadd.f32 %v1623, %v1641
        %v1650 = vadd.f32 %v1624, %v1642
        %v1651 = vmax.f32 %v1643, 0.0
        %v1652 = vmax.f32 %v1644, 0.0
        %v1653 = vmax.f32 %v1645, 0.0
        %v1654 = vmax.f32 %v1646, 0.0
        %v1655 = vmax.f32 %v1647, 0.0
        %v1656 = vmax.f32 %v1648, 0.0
        %v1657 = vmax.f32 %v1649, 0.0
        %v1658 = vmax.f32 %v1650, 0.0
        %s1659 = scalar_lea.vmem %s379, 320 [#allocation12]
        %1660 = vst [vmem:[%s1659] sm:$0xff] %v1651
        %1661 = vst [vmem:[%s1659 + $0x8] sm:$0xff] %v1652
        %1662 = vst [vmem:[%s1659 + $0x10] sm:$0xff] %v1653
        %1663 = vst [vmem:[%s1659 + $0x18] sm:$0xff] %v1654
        %1664 = vst [vmem:[%s1659 + $0x20] sm:$0xff] %v1655
        %1665 = vst [vmem:[%s1659 + $0x28] sm:$0xff] %v1656
        %1666 = vst [vmem:[%s1659 + $0x30] sm:$0xff] %v1657
        %1667 = vst [vmem:[%s1659 + $0x38] sm:$0xff] %v1658
        %s1668 = sld [smem:[#allocation9 + $0x6]]
        %v1669 = vld [vmem:[#allocation2] sm:$0xff]
        %v1670 = vld [vmem:[#allocation2 + $0x8] sm:$0xff]
        %v1671 = vld [vmem:[#allocation2 + $0x10] sm:$0xff]
        %v1672 = vld [vmem:[#allocation2 + $0x18] sm:$0xff]
        %v1673 = vld [vmem:[#allocation2 + $0x20] sm:$0xff]
        %v1674 = vld [vmem:[#allocation2 + $0x28] sm:$0xff]
        %v1675 = vld [vmem:[#allocation2 + $0x30] sm:$0xff]
        %v1676 = vld [vmem:[#allocation2 + $0x38] sm:$0xff]
        %v1677 = vstv %s1668
        %v1678 = vmul.f32 %v1677, %v1669
        %v1679 = vmul.f32 %v1677, %v1670
        %v1680 = vmul.f32 %v1677, %v1671
        %v1681 = vmul.f32 %v1677, %v1672
        %v1682 = vmul.f32 %v1677, %v1673
        %v1683 = vmul.f32 %v1677, %v1674
        %v1684 = vmul.f32 %v1677, %v1675
        %v1685 = vmul.f32 %v1677, %v1676
        %s1686 = sld [smem:[#allocation10 + $0x6]]
        %v1687 = vstv %s1686
        %v1688 = vadd.f32 %v1678, %v1687
        %v1689 = vadd.f32 %v1679, %v1687
        %v1690 = vadd.f32 %v1680, %v1687
        %v1691 = vadd.f32 %v1681, %v1687
        %v1692 = vadd.f32 %v1682, %v1687
        %v1693 = vadd.f32 %v1683, %v1687
        %v1694 = vadd.f32 %v1684, %v1687
        %v1695 = vadd.f32 %v1685, %v1687
        %s1696 = sld [smem:[#allocation9 + $0xe]]
        %v1697 = vld [vmem:[%s741] sm:$0xff]
        %v1698 = vld [vmem:[%s741 + $0x8] sm:$0xff]
        %v1699 = vld [vmem:[%s741 + $0x10] sm:$0xff]
        %v1700 = vld [vmem:[%s741 + $0x18] sm:$0xff]
        %v1701 = vld [vmem:[%s741 + $0x20] sm:$0xff]
        %v1702 = vld [vmem:[%s741 + $0x28] sm:$0xff]
        %v1703 = vld [vmem:[%s741 + $0x30] sm:$0xff]
        %v1704 = vld [vmem:[%s741 + $0x38] sm:$0xff]
        %v1705 = vstv %s1696
        %v1706 = vmul.f32 %v1705, %v1697
        %v1707 = vmul.f32 %v1705, %v1698
        %v1708 = vmul.f32 %v1705, %v1699
        %v1709 = vmul.f32 %v1705, %v1700
        %v1710 = vmul.f32 %v1705, %v1701
        %v1711 = vmul.f32 %v1705, %v1702
        %v1712 = vmul.f32 %v1705, %v1703
        %v1713 = vmul.f32 %v1705, %v1704
        %v1714 = vadd.f32 %v1688, %v1706
        %v1715 = vadd.f32 %v1689, %v1707
        %v1716 = vadd.f32 %v1690, %v1708
        %v1717 = vadd.f32 %v1691, %v1709
        %v1718 = vadd.f32 %v1692, %v1710
        %v1719 = vadd.f32 %v1693, %v1711
        %v1720 = vadd.f32 %v1694, %v1712
        %v1721 = vadd.f32 %v1695, %v1713
        %s1722 = sld [smem:[#allocation9 + $0x16]]
        %v1723 = vld [vmem:[%s819] sm:$0xff]
        %v1724 = vld [vmem:[%s819 + $0x8] sm:$0xff]
        %v1725 = vld [vmem:[%s819 + $0x10] sm:$0xff]
        %v1726 = vld [vmem:[%s819 + $0x18] sm:$0xff]
        %v1727 = vld [vmem:[%s819 + $0x20] sm:$0xff]
        %v1728 = vld [vmem:[%s819 + $0x28] sm:$0xff]
        %v1729 = vld [vmem:[%s819 + $0x30] sm:$0xff]
        %v1730 = vld [vmem:[%s819 + $0x38] sm:$0xff]
        %v1731 = vstv %s1722
        %v1732 = vmul.f32 %v1731, %v1723
        %v1733 = vmul.f32 %v1731, %v1724
        %v1734 = vmul.f32 %v1731, %v1725
        %v1735 = vmul.f32 %v1731, %v1726
        %v1736 = vmul.f32 %v1731, %v1727
        %v1737 = vmul.f32 %v1731, %v1728
        %v1738 = vmul.f32 %v1731, %v1729
        %v1739 = vmul.f32 %v1731, %v1730
        %v1740 = vadd.f32 %v1714, %v1732
        %v1741 = vadd.f32 %v1715, %v1733
        %v1742 = vadd.f32 %v1716, %v1734
        %v1743 = vadd.f32 %v1717, %v1735
        %v1744 = vadd.f32 %v1718, %v1736
        %v1745 = vadd.f32 %v1719, %v1737
        %v1746 = vadd.f32 %v1720, %v1738
        %v1747 = vadd.f32 %v1721, %v1739
        %s1748 = sld [smem:[#allocation9 + $0x1e]]
        %v1749 = vld [vmem:[%s897] sm:$0xff]
        %v1750 = vld [vmem:[%s897 + $0x8] sm:$0xff]
        %v1751 = vld [vmem:[%s897 + $0x10] sm:$0xff]
        %v1752 = vld [vmem:[%s897 + $0x18] sm:$0xff]
        %v1753 = vld [vmem:[%s897 + $0x20] sm:$0xff]
        %v1754 = vld [vmem:[%s897 + $0x28] sm:$0xff]
        %v1755 = vld [vmem:[%s897 + $0x30] sm:$0xff]
        %v1756 = vld [vmem:[%s897 + $0x38] sm:$0xff]
        %v1757 = vstv %s1748
        %v1758 = vmul.f32 %v1757, %v1749
        %v1759 = vmul.f32 %v1757, %v1750
        %v1760 = vmul.f32 %v1757, %v1751
        %v1761 = vmul.f32 %v1757, %v1752
        %v1762 = vmul.f32 %v1757, %v1753
        %v1763 = vmul.f32 %v1757, %v1754
        %v1764 = vmul.f32 %v1757, %v1755
        %v1765 = vmul.f32 %v1757, %v1756
        %v1766 = vadd.f32 %v1740, %v1758
        %v1767 = vadd.f32 %v1741, %v1759
        %v1768 = vadd.f32 %v1742, %v1760
        %v1769 = vadd.f32 %v1743, %v1761
        %v1770 = vadd.f32 %v1744, %v1762
        %v1771 = vadd.f32 %v1745, %v1763
        %v1772 = vadd.f32 %v1746, %v1764
        %v1773 = vadd.f32 %v1747, %v1765
        %v1774 = vmax.f32 %v1766, 0.0
        %v1775 = vmax.f32 %v1767, 0.0
        %v1776 = vmax.f32 %v1768, 0.0
        %v1777 = vmax.f32 %v1769, 0.0
        %v1778 = vmax.f32 %v1770, 0.0
        %v1779 = vmax.f32 %v1771, 0.0
        %v1780 = vmax.f32 %v1772, 0.0
        %v1781 = vmax.f32 %v1773, 0.0
        %s1782 = scalar_lea.vmem %s379, 384 [#allocation12]
        %1783 = vst [vmem:[%s1782] sm:$0xff] %v1774
        %1784 = vst [vmem:[%s1782 + $0x8] sm:$0xff] %v1775
        %1785 = vst [vmem:[%s1782 + $0x10] sm:$0xff] %v1776
        %1786 = vst [vmem:[%s1782 + $0x18] sm:$0xff] %v1777
        %1787 = vst [vmem:[%s1782 + $0x20] sm:$0xff] %v1778
        %1788 = vst [vmem:[%s1782 + $0x28] sm:$0xff] %v1779
        %1789 = vst [vmem:[%s1782 + $0x30] sm:$0xff] %v1780
        %1790 = vst [vmem:[%s1782 + $0x38] sm:$0xff] %v1781
        %s1791 = sld [smem:[#allocation9 + $0x7]]
        %v1792 = vld [vmem:[#allocation2] sm:$0xff]
        %v1793 = vld [vmem:[#allocation2 + $0x8] sm:$0xff]
        %v1794 = vld [vmem:[#allocation2 + $0x10] sm:$0xff]
        %v1795 = vld [vmem:[#allocation2 + $0x18] sm:$0xff]
        %v1796 = vld [vmem:[#allocation2 + $0x20] sm:$0xff]
        %v1797 = vld [vmem:[#allocation2 + $0x28] sm:$0xff]
        %v1798 = vld [vmem:[#allocation2 + $0x30] sm:$0xff]
        %v1799 = vld [vmem:[#allocation2 + $0x38] sm:$0xff]
        %v1800 = vstv %s1791
        %v1801 = vmul.f32 %v1800, %v1792
        %v1802 = vmul.f32 %v1800, %v1793
        %v1803 = vmul.f32 %v1800, %v1794
        %v1804 = vmul.f32 %v1800, %v1795
        %v1805 = vmul.f32 %v1800, %v1796
        %v1806 = vmul.f32 %v1800, %v1797
        %v1807 = vmul.f32 %v1800, %v1798
        %v1808 = vmul.f32 %v1800, %v1799
        %s1809 = sld [smem:[#allocation10 + $0x7]]
        %v1810 = vstv %s1809
        %v1811 = vadd.f32 %v1801, %v1810
        %v1812 = vadd.f32 %v1802, %v1810
        %v1813 = vadd.f32 %v1803, %v1810
        %v1814 = vadd.f32 %v1804, %v1810
        %v1815 = vadd.f32 %v1805, %v1810
        %v1816 = vadd.f32 %v1806, %v1810
        %v1817 = vadd.f32 %v1807, %v1810
        %v1818 = vadd.f32 %v1808, %v1810
        %s1819 = sld [smem:[#allocation9 + $0xf]]
        %v1820 = vld [vmem:[%s741] sm:$0xff]
        %v1821 = vld [vmem:[%s741 + $0x8] sm:$0xff]
        %v1822 = vld [vmem:[%s741 + $0x10] sm:$0xff]
        %v1823 = vld [vmem:[%s741 + $0x18] sm:$0xff]
        %v1824 = vld [vmem:[%s741 + $0x20] sm:$0xff]
        %v1825 = vld [vmem:[%s741 + $0x28] sm:$0xff]
        %v1826 = vld [vmem:[%s741 + $0x30] sm:$0xff]
        %v1827 = vld [vmem:[%s741 + $0x38] sm:$0xff]
        %v1828 = vstv %s1819
        %v1829 = vmul.f32 %v1828, %v1820
        %v1830 = vmul.f32 %v1828, %v1821
        %v1831 = vmul.f32 %v1828, %v1822
        %v1832 = vmul.f32 %v1828, %v1823
        %v1833 = vmul.f32 %v1828, %v1824
        %v1834 = vmul.f32 %v1828, %v1825
        %v1835 = vmul.f32 %v1828, %v1826
        %v1836 = vmul.f32 %v1828, %v1827
        %v1837 = vadd.f32 %v1811, %v1829
        %v1838 = vadd.f32 %v1812, %v1830
        %v1839 = vadd.f32 %v1813, %v1831
        %v1840 = vadd.f32 %v1814, %v1832
        %v1841 = vadd.f32 %v1815, %v1833
        %v1842 = vadd.f32 %v1816, %v1834
        %v1843 = vadd.f32 %v1817, %v1835
        %v1844 = vadd.f32 %v1818, %v1836
        %s1845 = sld [smem:[#allocation9 + $0x17]]
        %v1846 = vld [vmem:[%s819] sm:$0xff]
        %v1847 = vld [vmem:[%s819 + $0x8] sm:$0xff]
        %v1848 = vld [vmem:[%s819 + $0x10] sm:$0xff]
        %v1849 = vld [vmem:[%s819 + $0x18] sm:$0xff]
        %v1850 = vld [vmem:[%s819 + $0x20] sm:$0xff]
        %v1851 = vld [vmem:[%s819 + $0x28] sm:$0xff]
        %v1852 = vld [vmem:[%s819 + $0x30] sm:$0xff]
        %v1853 = vld [vmem:[%s819 + $0x38] sm:$0xff]
        %v1854 = vstv %s1845
        %v1855 = vmul.f32 %v1854, %v1846
        %v1856 = vmul.f32 %v1854, %v1847
        %v1857 = vmul.f32 %v1854, %v1848
        %v1858 = vmul.f32 %v1854, %v1849
        %v1859 = vmul.f32 %v1854, %v1850
        %v1860 = vmul.f32 %v1854, %v1851
        %v1861 = vmul.f32 %v1854, %v1852
        %v1862 = vmul.f32 %v1854, %v1853
        %v1863 = vadd.f32 %v1837, %v1855
        %v1864 = vadd.f32 %v1838, %v1856
        %v1865 = vadd.f32 %v1839, %v1857
        %v1866 = vadd.f32 %v1840, %v1858
        %v1867 = vadd.f32 %v1841, %v1859
        %v1868 = vadd.f32 %v1842, %v1860
        %v1869 = vadd.f32 %v1843, %v1861
        %v1870 = vadd.f32 %v1844, %v1862
        %s1871 = sld [smem:[#allocation9 + $0x1f]]
        %v1872 = vld [vmem:[%s897] sm:$0xff]
        %v1873 = vld [vmem:[%s897 + $0x8] sm:$0xff]
        %v1874 = vld [vmem:[%s897 + $0x10] sm:$0xff]
        %v1875 = vld [vmem:[%s897 + $0x18] sm:$0xff]
        %v1876 = vld [vmem:[%s897 + $0x20] sm:$0xff]
        %v1877 = vld [vmem:[%s897 + $0x28] sm:$0xff]
        %v1878 = vld [vmem:[%s897 + $0x30] sm:$0xff]
        %v1879 = vld [vmem:[%s897 + $0x38] sm:$0xff]
        %v1880 = vstv %s1871
        %v1881 = vmul.f32 %v1880, %v1872
        %v1882 = vmul.f32 %v1880, %v1873
        %v1883 = vmul.f32 %v1880, %v1874
        %v1884 = vmul.f32 %v1880, %v1875
        %v1885 = vmul.f32 %v1880, %v1876
        %v1886 = vmul.f32 %v1880, %v1877
        %v1887 = vmul.f32 %v1880, %v1878
        %v1888 = vmul.f32 %v1880, %v1879
        %v1889 = vadd.f32 %v1863, %v1881
        %v1890 = vadd.f32 %v1864, %v1882
        %v1891 = vadd.f32 %v1865, %v1883
        %v1892 = vadd.f32 %v1866, %v1884
        %v1893 = vadd.f32 %v1867, %v1885
        %v1894 = vadd.f32 %v1868, %v1886
        %v1895 = vadd.f32 %v1869, %v1887
        %v1896 = vadd.f32 %v1870, %v1888
        %v1897 = vmax.f32 %v1889, 0.0
        %v1898 = vmax.f32 %v1890, 0.0
        %v1899 = vmax.f32 %v1891, 0.0
        %v1900 = vmax.f32 %v1892, 0.0
        %v1901 = vmax.f32 %v1893, 0.0
        %v1902 = vmax.f32 %v1894, 0.0
        %v1903 = vmax.f32 %v1895, 0.0
        %v1904 = vmax.f32 %v1896, 0.0
        %s1905 = scalar_lea.vmem %s379, 448 [#allocation12]
        %1906 = vst [vmem:[%s1905] sm:$0xff] %v1897
        %1907 = vst [vmem:[%s1905 + $0x8] sm:$0xff] %v1898
        %1908 = vst [vmem:[%s1905 + $0x10] sm:$0xff] %v1899
        %1909 = vst [vmem:[%s1905 + $0x18] sm:$0xff] %v1900
        %1910 = vst [vmem:[%s1905 + $0x20] sm:$0xff] %v1901
        %1911 = vst [vmem:[%s1905 + $0x28] sm:$0xff] %v1902
        %1912 = vst [vmem:[%s1905 + $0x30] sm:$0xff] %v1903
        %1913 = vst [vmem:[%s1905 + $0x38] sm:$0xff] %v1904
        %v1914 = vld [vmem:[#allocation3] sm:$0xff]
        %v1915 = vld [vmem:[#allocation3 + $0x8] sm:$0xff]
        %v1916 = vld [vmem:[#allocation3 + $0x10] sm:$0xff]
        %v1917 = vld [vmem:[#allocation3 + $0x18] sm:$0xff]
        %v1918 = vld [vmem:[#allocation3 + $0x20] sm:$0xff]
        %v1919 = vld [vmem:[#allocation3 + $0x28] sm:$0xff]
        %v1920 = vld [vmem:[#allocation3 + $0x30] sm:$0xff]
        %v1921 = vld [vmem:[#allocation3 + $0x38] sm:$0xff]
        %v1922 = vld [vmem:[%s6] sm:$0xf]
        %v1923 = vld [vmem:[%s7] sm:$0x1]
        %v1925 = vperm.slane %v1923, 0
        %vm1927 = vcmask 31744
        %v1929 = vsel %vm1927, %v1914, 0
        %v1932 = vsel %vm1927, %v1915, 0
        %v1935 = vsel %vm1927, %v1916, 0
        %v1938 = vsel %vm1927, %v1917, 0
        %v1941 = vsel %vm1927, %v1918, 0
        %v1944 = vsel %vm1927, %v1919, 0
        %v1947 = vsel %vm1927, %v1920, 0
        %v1950 = vsel %vm1927, %v1921, 0
        %vm1952 = vcmask 1043456
        %v1954 = vsel %vm1952, %v1922, 0
        %1956 = vmatpush.msra.mxu0 0.0
        %1957 = vmatpush.msra.mxu0 0.0
        %1958 = vmatpush.msra.mxu0 0.0
        %1959 = vmatpush.msra.mxu0 0.0
        %1960 = vmatpush.msra.mxu0 0.0
        %1961 = vmatpush.msra.mxu0 0.0
        %1962 = vmatpush.msra.mxu0 0.0
        %1963 = vmatpush.msra.mxu0 0.0
        %1964 = vmatpush.msra.mxu0 0.0
        %1965 = vmatpush.msra.mxu0 0.0
        %1966 = vmatpush.msra.mxu0 0.0
        %1967 = vmatpush.msra.mxu0 0.0
        %1968 = vmatpush.msra.mxu0 0.0
        %1969 = vmatpush.msra.mxu0 0.0
        %1970 = vmatpush.msra.mxu0 0.0
        %1971 = vmatpush.msra.mxu0 %v1954
        %1972 = vmatmul.f32.gmra.mxu0 %v1929
        %v1973 = vpop.f32.mrf.mxu0
        %v1974 = vadd.f32 %v1925, %v1973
        %1975 = vmatmul.f32.gmra.mxu0 %v1932
        %v1976 = vpop.f32.mrf.mxu0
        %v1977 = vadd.f32 %v1925, %v1976
        %1978 = vmatmul.f32.gmra.mxu0 %v1935
        %v1979 = vpop.f32.mrf.mxu0
        %v1980 = vadd.f32 %v1925, %v1979
        %1981 = vmatmul.f32.gmra.mxu0 %v1938
        %v1982 = vpop.f32.mrf.mxu0
        %v1983 = vadd.f32 %v1925, %v1982
        %1984 = vmatmul.f32.gmra.mxu0 %v1941
        %v1985 = vpop.f32.mrf.mxu0
        %v1986 = vadd.f32 %v1925, %v1985
        %1987 = vmatmul.f32.gmra.mxu0 %v1944
        %v1988 = vpop.f32.mrf.mxu0
        %v1989 = vadd.f32 %v1925, %v1988
        %1990 = vmatmul.f32.gmra.mxu0 %v1947
        %v1991 = vpop.f32.mrf.mxu0
        %v1992 = vadd.f32 %v1925, %v1991
        %1993 = vmatmul.f32.gmra.mxu0 %v1950
        %v1994 = vpop.f32.mrf.mxu0
        %v1995 = vadd.f32 %v1925, %v1994
        %1996 = vdwg.mxu0
        %vm1997 = vcmask 261120
        %1998 = vst.msk [vmem:[%s398] sm:$0xff] %vm1997, %v1974
        %1999 = vst.msk [vmem:[%s398 + $0x8] sm:$0xff] %vm1997, %v1977
        %2000 = vst.msk [vmem:[%s398 + $0x10] sm:$0xff] %vm1997, %v1980
        %2001 = vst.msk [vmem:[%s398 + $0x18] sm:$0xff] %vm1997, %v1983
        %2002 = vst.msk [vmem:[%s398 + $0x20] sm:$0xff] %vm1997, %v1986
        %2003 = vst.msk [vmem:[%s398 + $0x28] sm:$0xff] %vm1997, %v1989
        %2004 = vst.msk [vmem:[%s398 + $0x30] sm:$0xff] %vm1997, %v1992
        %2005 = vst.msk [vmem:[%s398 + $0x38] sm:$0xff] %vm1997, %v1995
        %s2006 = sand.u32 %s208, 1
        %s2007 = scalar_lea.sflag [#allocation5], %s2006
        %s2008 = sand.u32 %s208, 1
        %s2009 = smul.addr %s2008, 512
        %s2010 = scalar_lea.vmem [#allocation12], %s2009
        %s2011 = smul.u32 8, %s27
        %p2012 = scmp.lt.s32.totalorder %s2011, 15
        %s2013 = scalar_select %p2012, %s2011, 15
        %s2014 = smul.addr %s2013, 8
        %s2015 = scalar_lea.vmem %s9, %s2014
        // Predicated region
        $region69: #{tpu_custom_call.1} parent=51 // pred_check
          %p2016 = pneg %p218
        $region70: #{tpu_custom_call.1} parent=51 // pred_check_branch
          %2018 = sbr.rel (%p2016) target = $region72
        $region71: #{tpu_custom_call.1} parent=51 // pred_region
          #allocation14 [shape = 'u32[6]{0}', space=smem, size = 0x18, scoped, tag = 'DMA stride descriptor']
          %s2019 = smul.u32 8, %s27
          %2021 = vsyncadd %s2007, 0
          %s2022 = smul.addr %s2019, 8
          %s2023 = scalar_lea.hbm %s8, %s2022
          %s2025 = sshll.u32 1, 14
          %s2026 = sxor.u32 4294967295, %s2025
          %s2029 = sshll.u32 7, 18
          %s2030 = sxor.u32 4294967295, %s2029
          %s2031 = sand.u32 0, %s2030
          %s2033 = sor.u32 %s2031, 0
          %s2034 = sshll.u32 %s2010, 4
          %s2035 = int_to_ptr.vmem [resolvable:$true] %s2034
          %s2036 = sshll.u32 %s2023, 4
          %s2037 = int_to_ptr.hbm [resolvable:$true] %s2036
          %2043 = sst [smem:[#allocation14]] 1024
          %s2044 = scalar_lea.smem [#allocation14], 1
          %2045 = sst [smem:[%s2044]] 2048
          %s2046 = scalar_lea.smem [#allocation14], 2
          %2047 = sst [smem:[%s2046]] 8
          %s2048 = scalar_lea.smem [#allocation14], 3
          %2049 = sst [smem:[%s2048]] 128
          %s2050 = scalar_lea.smem [#allocation14], 4
          %2051 = sst [smem:[%s2050]] 128
          %s2052 = scalar_lea.smem [#allocation14], 5
          %2053 = sst [smem:[%s2052]] 8
          %2055 = dma.general %s2035, 8192, %s2037, %s2007, [#allocation13], [#allocation14], %s2033, 0
        $region72: #{tpu_custom_call.1} parent=51 // pred_fallthru
          _
        // Predicated region
        $region73: #{tpu_custom_call.1} parent=51 // pred_check
          %p2056 = pneg %p244
        $region74: #{tpu_custom_call.1} parent=51 // pred_check_branch
          %2058 = sbr.rel (%p2056) target = $region76
        $region75: #{tpu_custom_call.1} parent=51 // pred_region
          %s2059 = smul.u32 8, %s27
        $region76: #{tpu_custom_call.1} parent=51 // pred_fallthru
          _
      $region52: #{tpu_custom_call.1} parent=5 // pred_fallthru
        _
      %p2060 = scmp.le.s32.totalorder 2, %s22
      // Predicated region
      $region77: #{tpu_custom_call.1} parent=5 // pred_check
        %p2061 = pneg %p2060
      $region78: #{tpu_custom_call.1} parent=5 // pred_check_branch
        %2063 = sbr.rel (%p2061) target = $region80
      $region79: #{tpu_custom_call.1} parent=5 // pred_region
        %s2064 = ssub.s32 %s22, 2
        // Predicated region
        $region81: #{tpu_custom_call.1} parent=79 // pred_check
          %p2065 = pneg %p224
        $region82: #{tpu_custom_call.1} parent=79 // pred_check_branch
          %2067 = sbr.rel (%p2065) target = $region84
        $region83: #{tpu_custom_call.1} parent=79 // pred_region
          %s2068 = sand.u32 %s209, 1
          %s2069 = scalar_lea.sflag [#allocation5], %s2068
          %s2070 = sand.u32 %s209, 1
          %s2071 = smul.addr %s2070, 512
          %s2072 = scalar_lea.vmem [#allocation12], %s2071
          %2074 = dma.done %s2069, 8192
        $region84: #{tpu_custom_call.1} parent=79 // pred_fallthru
          _
        // Predicated region
        $region85: #{tpu_custom_call.1} parent=79 // pred_check
          %p2075 = pneg %p250
        $region86: #{tpu_custom_call.1} parent=79 // pred_check_branch
          %2077 = sbr.rel (%p2075) target = $region88
        $region87: #{tpu_custom_call.1} parent=79 // pred_region
          %s2078 = smul.u32 8, %s28
          %p2079 = scmp.lt.s32.totalorder %s2078, 15
          %s2080 = scalar_select %p2079, %s2078, 15
          %s2081 = smul.addr %s2080, 8
          %s2082 = scalar_lea.vmem %s9, %s2081
        $region88: #{tpu_custom_call.1} parent=79 // pred_fallthru
          _
      $region80: #{tpu_custom_call.1} parent=5 // pred_fallthru
        _
    $region6: #{tpu_custom_call.1} parent=1 // loop_footer
      %s26 = sadd.s32 1, %s22
    $region7: #{tpu_custom_call.1} parent=1 // loop_footer_branch
      %21 = sbr.rel target = $region3
    $region8: #{tpu_custom_call.1} parent=1 // loop_exit
      _
    %2083 = vsyncpa [#allocation5], 1
    %s2084 = scalar_lea.sflag [#allocation5], 1
    %2085 = vsyncpa %s2084, 1
    %2086 = vsyncpa [#allocation6], 1
    %s2087 = scalar_lea.sflag [#allocation6], 1
    %2088 = vsyncpa %s2087, 1
    %2089 = vsyncpa [#allocation8], 1
    %2090 = vsyncpa [#allocation11], 1

</llo_original>
